<compile_context>
chip_gen: v7x
topology: tpu7x:2x2x1
jax: 0.10.0
libtpu: 0.0.40
codegen_flags: <defaults>
</compile_context>

<pallas_src>
import functools

import jax
import jax.numpy as jnp
from jax import lax
from jax.experimental import pallas as pl
from jax.experimental.pallas import tpu as pltpu


# --------------------------------------------------------------------------------------
# Tiling helper
# --------------------------------------------------------------------------------------

def _pick_tile(dim, candidates):
    """Largest candidate that divides `dim`; otherwise the full dim (valid full-extent block)."""
    for c in candidates:
        if c <= dim and dim % c == 0:
            return c
    return dim


_M_TILES = (512, 256, 128, 64, 32, 16, 8)   # sublane axis: multiples of 8
_LANE_TILES = (512, 256, 128)               # lane axis: multiples of 128


# --------------------------------------------------------------------------------------
# Generic tiled linear:  o = act(x @ w + b)   (bf16 MXU, fp32 accumulation)
# --------------------------------------------------------------------------------------

def _linear_kernel(x_ref, w_ref, b_ref, o_ref, acc_ref, *, act, n_k):
    k = pl.program_id(2)

    @pl.when(k == 0)
    def _init():
        acc_ref[...] = jnp.zeros_like(acc_ref)

    acc_ref[...] += jnp.dot(x_ref[...].astype(jnp.bfloat16), w_ref[...],
                            preferred_element_type=jnp.float32)

    @pl.when(k == n_k - 1)
    def _finalize():
        y = acc_ref[...] + b_ref[...]
        if act == "relu":
            y = jnp.maximum(y, 0.0)
        elif act == "tanh":
            y = jnp.tanh(y)
        o_ref[...] = y.astype(o_ref.dtype)


def linear(x, w, b, act="none"):
    """x: (M, K) f32, w: (K, N) bf16, b: (N,) f32 -> (M, N) f32."""
    M, K = x.shape
    _, N = w.shape
    tm = _pick_tile(M, _M_TILES)
    tn = _pick_tile(N, _LANE_TILES)
    tk = _pick_tile(K, _LANE_TILES)
    n_k = K // tk
    grid = (M // tm, N // tn, n_k)
    return pl.pallas_call(
        functools.partial(_linear_kernel, act=act, n_k=n_k),
        out_shape=jax.ShapeDtypeStruct((M, N), jnp.float32),
        grid_spec=pltpu.PrefetchScalarGridSpec(
            num_scalar_prefetch=0,
            grid=grid,
            in_specs=[
                pl.BlockSpec((tm, tk), lambda i, j, k: (i, k)),
                pl.BlockSpec((tk, tn), lambda i, j, k: (k, j)),
                pl.BlockSpec((1, tn), lambda i, j, k: (0, j)),
            ],
            out_specs=pl.BlockSpec((tm, tn), lambda i, j, k: (i, j)),
            scratch_shapes=[pltpu.VMEM((tm, tn), jnp.float32)],
        ),
        compiler_params=pltpu.CompilerParams(
            dimension_semantics=("parallel", "parallel", "arbitrary")),
    )(x, w, b.reshape(1, N))


# --------------------------------------------------------------------------------------
# Standalone LayerNorm (row-tiled)  — used by the MLM head (no zero residual slab)
# --------------------------------------------------------------------------------------

def _layernorm_kernel(x_ref, g_ref, b_ref, o_ref, *, eps):
    x = x_ref[...]
    mean = jnp.mean(x, axis=-1, keepdims=True)
    var = jnp.mean(jnp.square(x - mean), axis=-1, keepdims=True)
    o_ref[...] = ((x - mean) * lax.rsqrt(var + eps) * g_ref[...]
                  + b_ref[...]).astype(o_ref.dtype)


def layernorm(x, gamma, beta, eps=1e-5):
    M, H = x.shape
    tm = _pick_tile(M, _M_TILES)
    return pl.pallas_call(
        functools.partial(_layernorm_kernel, eps=eps),
        out_shape=jax.ShapeDtypeStruct((M, H), jnp.float32),
        grid=(M // tm,),
        in_specs=[pl.BlockSpec((tm, H), lambda i: (i, 0)),
                  pl.BlockSpec((1, H), lambda i: (0, 0)),
                  pl.BlockSpec((1, H), lambda i: (0, 0))],
        out_specs=pl.BlockSpec((tm, H), lambda i: (i, 0)),
        compiler_params=pltpu.CompilerParams(dimension_semantics=("parallel",)),
    )(x, gamma.reshape(1, H), beta.reshape(1, H))


# --------------------------------------------------------------------------------------
# Fused MHA sub-layer:  Y = LayerNorm(X + MHA(X))      one pallas_call per layer
#   - fused [H, 3H] QKV projection, per-head masked softmax, Wo projection, AddNorm
#   - head split/merge via in-kernel column slices (no HBM transposes, lane-dense output)
# --------------------------------------------------------------------------------------

def _mha_addnorm_kernel(vl_ref, x_ref, wqkv_ref, bqkv_ref, wo_ref, bo_ref,
                        g_ref, b_ref, o_ref, *, num_heads, eps):
    bidx = pl.program_id(0)
    x = x_ref[0]                      # (S, H) f32
    S, H = x.shape
    Dh = H // num_heads
    scale = 1.0 / float(Dh) ** 0.5

    # Fused QKV projection on the MXU (bf16 in, fp32 acc).
    qkv = jnp.dot(x.astype(jnp.bfloat16), wqkv_ref[...],
                  preferred_element_type=jnp.float32) + bqkv_ref[...]     # (S, 3H)

    vl = vl_ref[bidx]
    key_mask = lax.broadcasted_iota(jnp.int32, (S, S), 1) < vl

    attn = jnp.zeros((S, H), jnp.float32)
    for h in range(num_heads):                                            # static unroll
        qh = qkv[:, h * Dh:(h + 1) * Dh].astype(jnp.bfloat16)
        kh = qkv[:, H + h * Dh:H + (h + 1) * Dh].astype(jnp.bfloat16)
        vh = qkv[:, 2 * H + h * Dh:2 * H + (h + 1) * Dh].astype(jnp.bfloat16)

        # q @ k^T without materializing the transpose.
        s = lax.dot_general(qh, kh, (((1,), (1,)), ((), ())),
                            preferred_element_type=jnp.float32) * scale   # (S, S)
        s = jnp.where(key_mask, s, -1e9)
        s = s - jnp.max(s, axis=-1, keepdims=True)
        p = jnp.exp(s)
        p = p * pl.reciprocal(jnp.sum(p, axis=-1, keepdims=True), approx=True)

        ctx = jnp.dot(p.astype(jnp.bfloat16), vh,
                      preferred_element_type=jnp.float32)                 # (S, Dh)
        # Output projection folded per-head: ctx_h @ Wo[h*Dh:(h+1)*Dh, :]
        attn = attn + jnp.dot(ctx.astype(jnp.bfloat16),
                              wo_ref[h * Dh:(h + 1) * Dh, :],
                              preferred_element_type=jnp.float32)
    attn = attn + bo_ref[...]

    # Residual add + LayerNorm epilogue (hides under the matmuls above).
    z = x + attn
    mean = jnp.mean(z, axis=-1, keepdims=True)
    var = jnp.mean(jnp.square(z - mean), axis=-1, keepdims=True)
    o_ref[0] = ((z - mean) * lax.rsqrt(var + eps) * g_ref[...]
                + b_ref[...]).astype(o_ref.dtype)


def mha_addnorm(X, valid_lens, wqkv, bqkv, wo, bo, gamma, beta, num_heads, eps=1e-5):
    B, S, H = X.shape
    grid_spec = pltpu.PrefetchScalarGridSpec(
        num_scalar_prefetch=1,
        grid=(B,),
        in_specs=[
            pl.BlockSpec((1, S, H), lambda b, vl: (b, 0, 0)),
            pl.BlockSpec((H, 3 * H), lambda b, vl: (0, 0)),
            pl.BlockSpec((1, 3 * H), lambda b, vl: (0, 0)),
            pl.BlockSpec((H, H), lambda b, vl: (0, 0)),
            pl.BlockSpec((1, H), lambda b, vl: (0, 0)),
            pl.BlockSpec((1, H), lambda b, vl: (0, 0)),
            pl.BlockSpec((1, H), lambda b, vl: (0, 0)),
        ],
        out_specs=pl.BlockSpec((1, S, H), lambda b, vl: (b, 0, 0)),
    )
    return pl.pallas_call(
        functools.partial(_mha_addnorm_kernel, num_heads=num_heads, eps=eps),
        out_shape=jax.ShapeDtypeStruct((B, S, H), jnp.float32),
        grid_spec=grid_spec,
        compiler_params=pltpu.CompilerParams(dimension_semantics=("parallel",)),
    )(valid_lens.astype(jnp.int32), X, wqkv, bqkv.reshape(1, 3 * H), wo,
      bo.reshape(1, H), gamma.reshape(1, H), beta.reshape(1, H))


# --------------------------------------------------------------------------------------
# Fused FFN sub-layer:  Z = LayerNorm(Y + relu(Y @ W1 + b1) @ W2 + b2)   (row-tiled)
# --------------------------------------------------------------------------------------

def _ffn_addnorm_kernel(y_ref, w1_ref, b1_ref, w2_ref, b2_ref, g_ref, b_ref, o_ref, *, eps):
    y = y_ref[...]                                                        # (tm, H) f32
    h = jnp.dot(y.astype(jnp.bfloat16), w1_ref[...],
                preferred_element_type=jnp.float32) + b1_ref[...]
    h = jnp.maximum(h, 0.0)
    f = jnp.dot(h.astype(jnp.bfloat16), w2_ref[...],
                preferred_element_type=jnp.float32) + b2_ref[...]
    z = y + f
    mean = jnp.mean(z, axis=-1, keepdims=True)
    var = jnp.mean(jnp.square(z - mean), axis=-1, keepdims=True)
    o_ref[...] = ((z - mean) * lax.rsqrt(var + eps) * g_ref[...]
                  + b_ref[...]).astype(o_ref.dtype)


def ffn_addnorm(Y, w1, b1, w2, b2, gamma, beta, eps=1e-5):
    M, H = Y.shape
    F = w1.shape[1]
    tm = _pick_tile(M, _M_TILES)
    return pl.pallas_call(
        functools.partial(_ffn_addnorm_kernel, eps=eps),
        out_shape=jax.ShapeDtypeStruct((M, H), jnp.float32),
        grid=(M // tm,),
        in_specs=[
            pl.BlockSpec((tm, H), lambda i: (i, 0)),
            pl.BlockSpec((H, F), lambda i: (0, 0)),
            pl.BlockSpec((1, F), lambda i: (0, 0)),
            pl.BlockSpec((F, H), lambda i: (0, 0)),
            pl.BlockSpec((1, H), lambda i: (0, 0)),
            pl.BlockSpec((1, H), lambda i: (0, 0)),
            pl.BlockSpec((1, H), lambda i: (0, 0)),
        ],
        out_specs=pl.BlockSpec((tm, H), lambda i: (i, 0)),
        compiler_params=pltpu.CompilerParams(dimension_semantics=("parallel",)),
    )(Y, w1, b1.reshape(1, F), w2, b2.reshape(1, H),
      gamma.reshape(1, H), beta.reshape(1, H))


# --------------------------------------------------------------------------------------
# Model assembly (only gathers / reshapes remain plain-JAX glue)
# --------------------------------------------------------------------------------------

def encoder_block(p, X, valid_lens, num_heads):
    B, S, H = X.shape
    Y = mha_addnorm(X, valid_lens, p["Wqkv"], p["bqkv"], p["Wo"], p["bo"],
                    p["ln1_g"], p["ln1_b"], num_heads)
    Z = ffn_addnorm(Y.reshape(B * S, H), p["W1"], p["b1"], p["W2"], p["b2"],
                    p["ln2_g"], p["ln2_b"])
    return Z.reshape(B, S, H)


def bert_forward(params, tokens, segments, valid_lens, pred_positions, num_heads):
    B, S = tokens.shape
    H = params["tok_emb"].shape[1]

    # Embedding lookups are table gathers -> plain-JAX glue; dense math is in kernels.
    X = (params["tok_emb"][tokens]
         + params["seg_emb"][segments]
         + params["pos_emb"][0, :S, :])

    if valid_lens is None:
        valid_lens = jnp.full((B,), S, dtype=jnp.int32)

    for p in params["layers"]:
        X = encoder_block(p, X, valid_lens, num_heads)
    encoded_X = X

    # MaskLM head
    mlm_Y_hat = None
    if pred_positions is not None:
        P = pred_positions.shape[1]
        batch_idx = jnp.repeat(jnp.arange(B), P)
        masked_X = encoded_X[batch_idx, pred_positions.reshape(-1)]  # (B*P, H) gather (glue)
        h = linear(masked_X, params["mlm_W1"], params["mlm_b1"], act="relu")
        h = layernorm(h, params["mlm_ln_g"], params["mlm_ln_b"])
        mlm_Y_hat = linear(h, params["mlm_W2"], params["mlm_b2"]).reshape(B, P, -1)

    # NSP head on the <cls> token
    cls = encoded_X[:, 0, :]
    hid = linear(cls, params["hid_W"], params["hid_b"], act="tanh")
    nsp_Y_hat = linear(hid, params["nsp_W"], params["nsp_b"])

    return encoded_X, mlm_Y_hat, nsp_Y_hat


# --------------------------------------------------------------------------------------
# Deterministic parameter init (weights stored in bf16, biases / LN / embeddings in f32)
# --------------------------------------------------------------------------------------

def init_params(key, vocab_size, num_hiddens, ffn_num_hiddens, num_layers, max_len):
    H = num_hiddens
    keys = jax.random.split(key, 8 + num_layers)

    def normal(k, shape, scale=0.02):
        return scale * jax.random.normal(k, shape, dtype=jnp.float32)

    def wnormal(k, shape, scale=0.02):
        return normal(k, shape, scale).astype(jnp.bfloat16)

    params = {
        "tok_emb": normal(keys[0], (vocab_size, H)),
        "seg_emb": normal(keys[1], (2, H)),
        "pos_emb": normal(keys[2], (1, max_len, H)),
        "hid_W": wnormal(keys[3], (H, H)),
        "hid_b": jnp.zeros((H,), jnp.float32),
        "mlm_W1": wnormal(keys[4], (H, H)),
        "mlm_b1": jnp.zeros((H,), jnp.float32),
        "mlm_ln_g": jnp.ones((H,), jnp.float32),
        "mlm_ln_b": jnp.zeros((H,), jnp.float32),
        "mlm_W2": wnormal(keys[5], (H, vocab_size)),
        "mlm_b2": jnp.zeros((vocab_size,), jnp.float32),
        "nsp_W": wnormal(keys[6], (H, 2)),
        "nsp_b": jnp.zeros((2,), jnp.float32),
        "layers": [],
    }
    for l in range(num_layers):
        lk = jax.random.split(keys[7 + l], 4)
        params["layers"].append({
            "Wqkv": wnormal(lk[0], (H, 3 * H)),       # fused [Wq | Wk | Wv]
            "bqkv": jnp.zeros((3 * H,), jnp.float32),
            "Wo": wnormal(lk[1], (H, H)),
            "bo": jnp.zeros((H,), jnp.float32),
            "ln1_g": jnp.ones((H,), jnp.float32), "ln1_b": jnp.zeros((H,), jnp.float32),
            "W1": wnormal(lk[2], (H, ffn_num_hiddens)),
            "b1": jnp.zeros((ffn_num_hiddens,), jnp.float32),
            "W2": wnormal(lk[3], (ffn_num_hiddens, H)),
            "b2": jnp.zeros((H,), jnp.float32),
            "ln2_g": jnp.ones((H,), jnp.float32), "ln2_b": jnp.zeros((H,), jnp.float32),
        })
    return params


# --------------------------------------------------------------------------------------
# Main
# --------------------------------------------------------------------------------------

if __name__ == "__main__":
    vocab_size = 64
    num_hiddens = 32
    num_heads = 2
    ffn_num_hiddens = 64
    num_layers = 2
    max_len = 16
    B, S = 2, 8

    key = jax.random.PRNGKey(0)
    k_params, k_tokens = jax.random.split(key)

    params = init_params(k_params, vocab_size, num_hiddens, ffn_num_hiddens,
                         num_layers, max_len)

    tokens = jax.random.randint(k_tokens, (B, S), 0, vocab_size, dtype=jnp.int32)
    segments = jnp.array([[0, 0, 0, 0, 1, 1, 1, 1],
                          [0, 0, 0, 1, 1, 1, 1, 1]], dtype=jnp.int32)
    valid_lens = jnp.array([8, 7], dtype=jnp.int32)
    pred_positions = jnp.array([[1, 5, 2], [6, 1, 5]], dtype=jnp.int32)

    bert_fwd = jax.jit(bert_forward, static_argnums=(5,))
    encoded_X, mlm_Y_hat, nsp_Y_hat = bert_fwd(
        params, tokens, segments, valid_lens, pred_positions, num_heads)

    jax.block_until_ready((encoded_X, mlm_Y_hat, nsp_Y_hat))
    assert encoded_X.shape == (B, S, num_hiddens)
    assert mlm_Y_hat.shape == (B, 3, vocab_size)
    assert nsp_Y_hat.shape == (B, 2)
    print("KERNEL_OK")
</pallas_src>

<mosaic_0001>
module attributes {stable_mosaic.version = 11 : i64} {
  func.func @_mha_addnorm_kernel(%arg0: i32, %arg1: memref<2xi32, #tpu.memory_space<smem>>, %arg2: memref<1x8x32xf32, #tpu.memory_space<vmem>>, %arg3: memref<32x96xbf16, #tpu.memory_space<vmem>>, %arg4: memref<1x96xf32, #tpu.memory_space<vmem>>, %arg5: memref<32x32xbf16, #tpu.memory_space<vmem>>, %arg6: memref<1x32xf32, #tpu.memory_space<vmem>>, %arg7: memref<1x32xf32, #tpu.memory_space<vmem>>, %arg8: memref<1x32xf32, #tpu.memory_space<vmem>>, %arg9: memref<1x8x32xf32, #tpu.memory_space<vmem>>) attributes {dimension_semantics = [#tpu.dimension_semantics<parallel>], iteration_bounds = array<i64: 2>, scalar_prefetch = 1 : i64, scratch_operands = 0 : i64, tpu.core_type = #tpu.core_type<tc>, window_params = [{transform_indices = @transform_0, window_bounds = array<i64: 1, 8, 32>}, {pipeline_mode = #tpu.pipeline_mode<synchronous>, transform_indices = @transform_1, window_bounds = array<i64: 32, 96>}, {pipeline_mode = #tpu.pipeline_mode<synchronous>, transform_indices = @transform_2, window_bounds = array<i64: 1, 96>}, {pipeline_mode = #tpu.pipeline_mode<synchronous>, transform_indices = @transform_3, window_bounds = array<i64: 32, 32>}, {pipeline_mode = #tpu.pipeline_mode<synchronous>, transform_indices = @transform_4, window_bounds = array<i64: 1, 32>}, {pipeline_mode = #tpu.pipeline_mode<synchronous>, transform_indices = @transform_5, window_bounds = array<i64: 1, 32>}, {pipeline_mode = #tpu.pipeline_mode<synchronous>, transform_indices = @transform_6, window_bounds = array<i64: 1, 32>}, {transform_indices = @transform_7, window_bounds = array<i64: 1, 8, 32>}]} {
    %c0 = arith.constant 0 : index
    %c0_0 = arith.constant 0 : index
    %c0_1 = arith.constant 0 : index
    %0 = vector.load %arg2[%c0, %c0_0, %c0_1] : memref<1x8x32xf32, #tpu.memory_space<vmem>>, vector<1x8x32xf32>
    %1 = vector.shape_cast %0 : vector<1x8x32xf32> to vector<8x32xf32>
    %2 = arith.truncf %1 : vector<8x32xf32> to vector<8x32xbf16>
    %c0_2 = arith.constant 0 : index
    %c0_3 = arith.constant 0 : index
    %3 = vector.load %arg3[%c0_2, %c0_3] : memref<32x96xbf16, #tpu.memory_space<vmem>>, vector<32x96xbf16>
    %cst = arith.constant dense<0.000000e+00> : vector<8x96xf32>
    %4 = tpu.matmul %2, %3, %cst {dimension_numbers = #tpu.dot_dimension_numbers<[1], [0], [0], [1], [0, 0, 1, 1], [], []>} : vector<8x32xbf16>, vector<32x96xbf16>, vector<8x96xf32> -> vector<8x96xf32>
    %c0_4 = arith.constant 0 : index
    %c0_5 = arith.constant 0 : index
    %5 = vector.load %arg4[%c0_4, %c0_5] : memref<1x96xf32, #tpu.memory_space<vmem>>, vector<1x96xf32>
    %6 = vector.broadcast %5 : vector<1x96xf32> to vector<8x96xf32>
    %7 = arith.addf %4, %6 : vector<8x96xf32>
    %8 = arith.index_cast %arg0 : i32 to index
    %9 = memref.load %arg1[%8] : memref<2xi32, #tpu.memory_space<smem>>
    %10 = tpu.iota {dimensions = array<i32: 1>} : vector<8x8xi32>
    %11 = vector.broadcast %9 : i32 to vector<8x8xi32>
    %12 = arith.cmpi slt, %10, %11 : vector<8x8xi32>
    %cst_6 = arith.constant 0.000000e+00 : f32
    %13 = vector.broadcast %cst_6 : f32 to vector<8x32xf32>
    %14 = vector.extract_strided_slice %7 {offsets = [0, 0], sizes = [8, 16], strides = [1, 1]} : vector<8x96xf32> to vector<8x16xf32>
    %15 = arith.truncf %14 : vector<8x16xf32> to vector<8x16xbf16>
    %16 = vector.extract_strided_slice %7 {offsets = [0, 32], sizes = [8, 16], strides = [1, 1]} : vector<8x96xf32> to vector<8x16xf32>
    %17 = arith.truncf %16 : vector<8x16xf32> to vector<8x16xbf16>
    %18 = vector.extract_strided_slice %7 {offsets = [0, 64], sizes = [8, 16], strides = [1, 1]} : vector<8x96xf32> to vector<8x16xf32>
    %19 = arith.truncf %18 : vector<8x16xf32> to vector<8x16xbf16>
    %cst_7 = arith.constant dense<0.000000e+00> : vector<8x8xf32>
    %20 = tpu.matmul %15, %17, %cst_7 {dimension_numbers = #tpu.dot_dimension_numbers<[1], [1], [0], [0], [0, 0, 1, 0], [], []>} : vector<8x16xbf16>, vector<8x16xbf16>, vector<8x8xf32> -> vector<8x8xf32>
    %cst_8 = arith.constant 2.500000e-01 : f32
    %21 = vector.broadcast %cst_8 : f32 to vector<8x8xf32>
    %22 = arith.mulf %20, %21 : vector<8x8xf32>
    %cst_9 = arith.constant -1.000000e+09 : f32
    %23 = vector.broadcast %cst_9 : f32 to vector<8x8xf32>
    %24 = arith.select %12, %22, %23 : vector<8x8xi1>, vector<8x8xf32>
    %cst_10 = arith.constant dense<0xFF800000> : vector<8xf32>
    %25 = vector.multi_reduction <maximumf>, %24, %cst_10 [1] : vector<8x8xf32> to vector<8xf32>
    %26 = vector.shape_cast %25 : vector<8xf32> to vector<8x1xf32>
    %27 = vector.broadcast %26 : vector<8x1xf32> to vector<8x8xf32>
    %28 = arith.subf %24, %27 : vector<8x8xf32>
    %29 = math.exp %28 : vector<8x8xf32>
    %cst_11 = arith.constant dense<0.000000e+00> : vector<8xf32>
    %30 = vector.multi_reduction <add>, %29, %cst_11 [1] : vector<8x8xf32> to vector<8xf32>
    %31 = vector.shape_cast %30 : vector<8xf32> to vector<8x1xf32>
    %32 = tpu.reciprocal %31 {approx = true} : vector<8x1xf32> -> vector<8x1xf32>
    %33 = vector.broadcast %32 : vector<8x1xf32> to vector<8x8xf32>
    %34 = arith.mulf %29, %33 : vector<8x8xf32>
    %35 = arith.truncf %34 : vector<8x8xf32> to vector<8x8xbf16>
    %cst_12 = arith.constant dense<0.000000e+00> : vector<8x16xf32>
    %36 = tpu.matmul %35, %19, %cst_12 {dimension_numbers = #tpu.dot_dimension_numbers<[1], [0], [0], [1], [0, 0, 1, 1], [], []>} : vector<8x8xbf16>, vector<8x16xbf16>, vector<8x16xf32> -> vector<8x16xf32>
    %37 = arith.truncf %36 : vector<8x16xf32> to vector<8x16xbf16>
    %c0_13 = arith.constant 0 : index
    %c0_14 = arith.constant 0 : index
    %38 = vector.load %arg5[%c0_13, %c0_14] : memref<32x32xbf16, #tpu.memory_space<vmem>>, vector<16x32xbf16>
    %cst_15 = arith.constant dense<0.000000e+00> : vector<8x32xf32>
    %39 = tpu.matmul %37, %38, %cst_15 {dimension_numbers = #tpu.dot_dimension_numbers<[1], [0], [0], [1], [0, 0, 1, 1], [], []>} : vector<8x16xbf16>, vector<16x32xbf16>, vector<8x32xf32> -> vector<8x32xf32>
    %40 = arith.addf %13, %39 : vector<8x32xf32>
    %41 = vector.extract_strided_slice %7 {offsets = [0, 16], sizes = [8, 16], strides = [1, 1]} : vector<8x96xf32> to vector<8x16xf32>
    %42 = arith.truncf %41 : vector<8x16xf32> to vector<8x16xbf16>
    %43 = vector.extract_strided_slice %7 {offsets = [0, 48], sizes = [8, 16], strides = [1, 1]} : vector<8x96xf32> to vector<8x16xf32>
    %44 = arith.truncf %43 : vector<8x16xf32> to vector<8x16xbf16>
    %45 = vector.extract_strided_slice %7 {offsets = [0, 80], sizes = [8, 16], strides = [1, 1]} : vector<8x96xf32> to vector<8x16xf32>
    %46 = arith.truncf %45 : vector<8x16xf32> to vector<8x16xbf16>
    %cst_16 = arith.constant dense<0.000000e+00> : vector<8x8xf32>
    %47 = tpu.matmul %42, %44, %cst_16 {dimension_numbers = #tpu.dot_dimension_numbers<[1], [1], [0], [0], [0, 0, 1, 0], [], []>} : vector<8x16xbf16>, vector<8x16xbf16>, vector<8x8xf32> -> vector<8x8xf32>
    %cst_17 = arith.constant 2.500000e-01 : f32
    %48 = vector.broadcast %cst_17 : f32 to vector<8x8xf32>
    %49 = arith.mulf %47, %48 : vector<8x8xf32>
    %cst_18 = arith.constant -1.000000e+09 : f32
    %50 = vector.broadcast %cst_18 : f32 to vector<8x8xf32>
    %51 = arith.select %12, %49, %50 : vector<8x8xi1>, vector<8x8xf32>
    %cst_19 = arith.constant dense<0xFF800000> : vector<8xf32>
    %52 = vector.multi_reduction <maximumf>, %51, %cst_19 [1] : vector<8x8xf32> to vector<8xf32>
    %53 = vector.shape_cast %52 : vector<8xf32> to vector<8x1xf32>
    %54 = vector.broadcast %53 : vector<8x1xf32> to vector<8x8xf32>
    %55 = arith.subf %51, %54 : vector<8x8xf32>
    %56 = math.exp %55 : vector<8x8xf32>
    %cst_20 = arith.constant dense<0.000000e+00> : vector<8xf32>
    %57 = vector.multi_reduction <add>, %56, %cst_20 [1] : vector<8x8xf32> to vector<8xf32>
    %58 = vector.shape_cast %57 : vector<8xf32> to vector<8x1xf32>
    %59 = tpu.reciprocal %58 {approx = true} : vector<8x1xf32> -> vector<8x1xf32>
    %60 = vector.broadcast %59 : vector<8x1xf32> to vector<8x8xf32>
    %61 = arith.mulf %56, %60 : vector<8x8xf32>
    %62 = arith.truncf %61 : vector<8x8xf32> to vector<8x8xbf16>
    %cst_21 = arith.constant dense<0.000000e+00> : vector<8x16xf32>
    %63 = tpu.matmul %62, %46, %cst_21 {dimension_numbers = #tpu.dot_dimension_numbers<[1], [0], [0], [1], [0, 0, 1, 1], [], []>} : vector<8x8xbf16>, vector<8x16xbf16>, vector<8x16xf32> -> vector<8x16xf32>
    %64 = arith.truncf %63 : vector<8x16xf32> to vector<8x16xbf16>
    %c16 = arith.constant 16 : index
    %c0_22 = arith.constant 0 : index
    %65 = vector.load %arg5[%c16, %c0_22] : memref<32x32xbf16, #tpu.memory_space<vmem>>, vector<16x32xbf16>
    %cst_23 = arith.constant dense<0.000000e+00> : vector<8x32xf32>
    %66 = tpu.matmul %64, %65, %cst_23 {dimension_numbers = #tpu.dot_dimension_numbers<[1], [0], [0], [1], [0, 0, 1, 1], [], []>} : vector<8x16xbf16>, vector<16x32xbf16>, vector<8x32xf32> -> vector<8x32xf32>
    %67 = arith.addf %40, %66 : vector<8x32xf32>
    %c0_24 = arith.constant 0 : index
    %c0_25 = arith.constant 0 : index
    %68 = vector.load %arg6[%c0_24, %c0_25] : memref<1x32xf32, #tpu.memory_space<vmem>>, vector<1x32xf32>
    %69 = vector.broadcast %68 : vector<1x32xf32> to vector<8x32xf32>
    %70 = arith.addf %67, %69 : vector<8x32xf32>
    %71 = arith.addf %1, %70 : vector<8x32xf32>
    %cst_26 = arith.constant dense<0.000000e+00> : vector<8xf32>
    %72 = vector.multi_reduction <add>, %71, %cst_26 [1] : vector<8x32xf32> to vector<8xf32>
    %73 = vector.shape_cast %72 : vector<8xf32> to vector<8x1xf32>
    %cst_27 = arith.constant 3.200000e+01 : f32
    %74 = vector.broadcast %cst_27 : f32 to vector<8x1xf32>
    %75 = arith.divf %73, %74 : vector<8x1xf32>
    %76 = vector.broadcast %75 : vector<8x1xf32> to vector<8x32xf32>
    %77 = arith.subf %71, %76 : vector<8x32xf32>
    %78 = arith.mulf %77, %77 : vector<8x32xf32>
    %cst_28 = arith.constant dense<0.000000e+00> : vector<8xf32>
    %79 = vector.multi_reduction <add>, %78, %cst_28 [1] : vector<8x32xf32> to vector<8xf32>
    %80 = vector.shape_cast %79 : vector<8xf32> to vector<8x1xf32>
    %cst_29 = arith.constant 3.200000e+01 : f32
    %81 = vector.broadcast %cst_29 : f32 to vector<8x1xf32>
    %82 = arith.divf %80, %81 : vector<8x1xf32>
    %83 = vector.broadcast %75 : vector<8x1xf32> to vector<8x32xf32>
    %84 = arith.subf %71, %83 : vector<8x32xf32>
    %cst_30 = arith.constant 9.99999974E-6 : f32
    %85 = vector.broadcast %cst_30 : f32 to vector<8x1xf32>
    %86 = arith.addf %82, %85 : vector<8x1xf32>
    %87 = math.rsqrt %86 : vector<8x1xf32>
    %88 = vector.broadcast %87 : vector<8x1xf32> to vector<8x32xf32>
    %89 = arith.mulf %84, %88 : vector<8x32xf32>
    %c0_31 = arith.constant 0 : index
    %c0_32 = arith.constant 0 : index
    %90 = vector.load %arg7[%c0_31, %c0_32] : memref<1x32xf32, #tpu.memory_space<vmem>>, vector<1x32xf32>
    %91 = vector.broadcast %90 : vector<1x32xf32> to vector<8x32xf32>
    %92 = arith.mulf %89, %91 : vector<8x32xf32>
    %c0_33 = arith.constant 0 : index
    %c0_34 = arith.constant 0 : index
    %93 = vector.load %arg8[%c0_33, %c0_34] : memref<1x32xf32, #tpu.memory_space<vmem>>, vector<1x32xf32>
    %94 = vector.broadcast %93 : vector<1x32xf32> to vector<8x32xf32>
    %95 = arith.addf %92, %94 : vector<8x32xf32>
    %c0_35 = arith.constant 0 : index
    %c0_36 = arith.constant 0 : index
    %c0_37 = arith.constant 0 : index
    %96 = vector.load %arg9[%c0_35, %c0_36, %c0_37] : memref<1x8x32xf32, #tpu.memory_space<vmem>>, vector<1x8x32xf32>
    %97 = vector.shape_cast %96 : vector<1x8x32xf32> to vector<8x32xf32>
    %98 = vector.shape_cast %95 : vector<8x32xf32> to vector<1x8x32xf32>
    tpu.vector_store %arg9[%c0_35, %c0_36, %c0_37], %98 {strides = array<i32>} : memref<1x8x32xf32, #tpu.memory_space<vmem>>, vector<1x8x32xf32>,
    return
  }
  func.func @transform_0(%arg0: i32, %arg1: memref<2xi32, #tpu.memory_space<smem>>) -> (i32, i32, i32) {
    %c0_i32 = arith.constant 0 : i32
    %c0_i32_0 = arith.constant 0 : i32
    %c0_i32_1 = arith.constant 0 : i32
    return %arg0, %c0_i32, %c0_i32_0 : i32, i32, i32
  }
  func.func @transform_1(%arg0: i32, %arg1: memref<2xi32, #tpu.memory_space<smem>>) -> (i32, i32) {
    %c0_i32 = arith.constant 0 : i32
    %c0_i32_0 = arith.constant 0 : i32
    %c0_i32_1 = arith.constant 0 : i32
    return %c0_i32, %c0_i32_0 : i32, i32
  }
  func.func @transform_2(%arg0: i32, %arg1: memref<2xi32, #tpu.memory_space<smem>>) -> (i32, i32) {
    %c0_i32 = arith.constant 0 : i32
    %c0_i32_0 = arith.constant 0 : i32
    %c0_i32_1 = arith.constant 0 : i32
    return %c0_i32, %c0_i32_0 : i32, i32
  }
  func.func @transform_3(%arg0: i32, %arg1: memref<2xi32, #tpu.memory_space<smem>>) -> (i32, i32) {
    %c0_i32 = arith.constant 0 : i32
    %c0_i32_0 = arith.constant 0 : i32
    %c0_i32_1 = arith.constant 0 : i32
    return %c0_i32, %c0_i32_0 : i32, i32
  }
  func.func @transform_4(%arg0: i32, %arg1: memref<2xi32, #tpu.memory_space<smem>>) -> (i32, i32) {
    %c0_i32 = arith.constant 0 : i32
    %c0_i32_0 = arith.constant 0 : i32
    %c0_i32_1 = arith.constant 0 : i32
    return %c0_i32, %c0_i32_0 : i32, i32
  }
  func.func @transform_5(%arg0: i32, %arg1: memref<2xi32, #tpu.memory_space<smem>>) -> (i32, i32) {
    %c0_i32 = arith.constant 0 : i32
    %c0_i32_0 = arith.constant 0 : i32
    %c0_i32_1 = arith.constant 0 : i32
    return %c0_i32, %c0_i32_0 : i32, i32
  }
  func.func @transform_6(%arg0: i32, %arg1: memref<2xi32, #tpu.memory_space<smem>>) -> (i32, i32) {
    %c0_i32 = arith.constant 0 : i32
    %c0_i32_0 = arith.constant 0 : i32
    %c0_i32_1 = arith.constant 0 : i32
    return %c0_i32, %c0_i32_0 : i32, i32
  }
  func.func @transform_7(%arg0: i32, %arg1: memref<2xi32, #tpu.memory_space<smem>>) -> (i32, i32, i32) {
    %c0_i32 = arith.constant 0 : i32
    %c0_i32_0 = arith.constant 0 : i32
    %c0_i32_1 = arith.constant 0 : i32
    return %arg0, %c0_i32, %c0_i32_0 : i32, i32, i32
  }
}

module attributes {stable_mosaic.version = 11 : i64} {
  func.func @_ffn_addnorm_kernel(%arg0: i32, %arg1: memref<16x32xf32, #tpu.memory_space<vmem>>, %arg2: memref<32x64xbf16, #tpu.memory_space<vmem>>, %arg3: memref<1x64xf32, #tpu.memory_space<vmem>>, %arg4: memref<64x32xbf16, #tpu.memory_space<vmem>>, %arg5: memref<1x32xf32, #tpu.memory_space<vmem>>, %arg6: memref<1x32xf32, #tpu.memory_space<vmem>>, %arg7: memref<1x32xf32, #tpu.memory_space<vmem>>, %arg8: memref<16x32xf32, #tpu.memory_space<vmem>>) attributes {dimension_semantics = [#tpu.dimension_semantics<parallel>], iteration_bounds = array<i64: 1>, scalar_prefetch = 0 : i64, scratch_operands = 0 : i64, tpu.core_type = #tpu.core_type<tc>, window_params = [{transform_indices = @transform_0, window_bounds = array<i64: 16, 32>}, {pipeline_mode = #tpu.pipeline_mode<synchronous>, transform_indices = @transform_1, window_bounds = array<i64: 32, 64>}, {pipeline_mode = #tpu.pipeline_mode<synchronous>, transform_indices = @transform_2, window_bounds = array<i64: 1, 64>}, {pipeline_mode = #tpu.pipeline_mode<synchronous>, transform_indices = @transform_3, window_bounds = array<i64: 64, 32>}, {pipeline_mode = #tpu.pipeline_mode<synchronous>, transform_indices = @transform_4, window_bounds = array<i64: 1, 32>}, {pipeline_mode = #tpu.pipeline_mode<synchronous>, transform_indices = @transform_5, window_bounds = array<i64: 1, 32>}, {pipeline_mode = #tpu.pipeline_mode<synchronous>, transform_indices = @transform_6, window_bounds = array<i64: 1, 32>}, {transform_indices = @transform_7, window_bounds = array<i64: 16, 32>}]} {
    %c0 = arith.constant 0 : index
    %c0_0 = arith.constant 0 : index
    %0 = vector.load %arg1[%c0, %c0_0] : memref<16x32xf32, #tpu.memory_space<vmem>>, vector<16x32xf32>
    %1 = arith.truncf %0 : vector<16x32xf32> to vector<16x32xbf16>
    %c0_1 = arith.constant 0 : index
    %c0_2 = arith.constant 0 : index
    %2 = vector.load %arg2[%c0_1, %c0_2] : memref<32x64xbf16, #tpu.memory_space<vmem>>, vector<32x64xbf16>
    %cst = arith.constant dense<0.000000e+00> : vector<16x64xf32>
    %3 = tpu.matmul %1, %2, %cst {dimension_numbers = #tpu.dot_dimension_numbers<[1], [0], [0], [1], [0, 0, 1, 1], [], []>} : vector<16x32xbf16>, vector<32x64xbf16>, vector<16x64xf32> -> vector<16x64xf32>
    %c0_3 = arith.constant 0 : index
    %c0_4 = arith.constant 0 : index
    %4 = vector.load %arg3[%c0_3, %c0_4] : memref<1x64xf32, #tpu.memory_space<vmem>>, vector<1x64xf32>
    %5 = vector.broadcast %4 : vector<1x64xf32> to vector<16x64xf32>
    %6 = arith.addf %3, %5 : vector<16x64xf32>
    %cst_5 = arith.constant 0.000000e+00 : f32
    %7 = vector.broadcast %cst_5 : f32 to vector<16x64xf32>
    %8 = arith.maximumf %6, %7 : vector<16x64xf32>
    %9 = arith.truncf %8 : vector<16x64xf32> to vector<16x64xbf16>
    %c0_6 = arith.constant 0 : index
    %c0_7 = arith.constant 0 : index
    %10 = vector.load %arg4[%c0_6, %c0_7] : memref<64x32xbf16, #tpu.memory_space<vmem>>, vector<64x32xbf16>
    %cst_8 = arith.constant dense<0.000000e+00> : vector<16x32xf32>
    %11 = tpu.matmul %9, %10, %cst_8 {dimension_numbers = #tpu.dot_dimension_numbers<[1], [0], [0], [1], [0, 0, 1, 1], [], []>} : vector<16x64xbf16>, vector<64x32xbf16>, vector<16x32xf32> -> vector<16x32xf32>
    %c0_9 = arith.constant 0 : index
    %c0_10 = arith.constant 0 : index
    %12 = vector.load %arg5[%c0_9, %c0_10] : memref<1x32xf32, #tpu.memory_space<vmem>>, vector<1x32xf32>
    %13 = vector.broadcast %12 : vector<1x32xf32> to vector<16x32xf32>
    %14 = arith.addf %11, %13 : vector<16x32xf32>
    %15 = arith.addf %0, %14 : vector<16x32xf32>
    %cst_11 = arith.constant dense<0.000000e+00> : vector<16xf32>
    %16 = vector.multi_reduction <add>, %15, %cst_11 [1] : vector<16x32xf32> to vector<16xf32>
    %17 = vector.shape_cast %16 : vector<16xf32> to vector<16x1xf32>
    %cst_12 = arith.constant 3.200000e+01 : f32
    %18 = vector.broadcast %cst_12 : f32 to vector<16x1xf32>
    %19 = arith.divf %17, %18 : vector<16x1xf32>
    %20 = vector.broadcast %19 : vector<16x1xf32> to vector<16x32xf32>
    %21 = arith.subf %15, %20 : vector<16x32xf32>
    %22 = arith.mulf %21, %21 : vector<16x32xf32>
    %cst_13 = arith.constant dense<0.000000e+00> : vector<16xf32>
    %23 = vector.multi_reduction <add>, %22, %cst_13 [1] : vector<16x32xf32> to vector<16xf32>
    %24 = vector.shape_cast %23 : vector<16xf32> to vector<16x1xf32>
    %cst_14 = arith.constant 3.200000e+01 : f32
    %25 = vector.broadcast %cst_14 : f32 to vector<16x1xf32>
    %26 = arith.divf %24, %25 : vector<16x1xf32>
    %27 = vector.broadcast %19 : vector<16x1xf32> to vector<16x32xf32>
    %28 = arith.subf %15, %27 : vector<16x32xf32>
    %cst_15 = arith.constant 9.99999974E-6 : f32
    %29 = vector.broadcast %cst_15 : f32 to vector<16x1xf32>
    %30 = arith.addf %26, %29 : vector<16x1xf32>
    %31 = math.rsqrt %30 : vector<16x1xf32>
    %32 = vector.broadcast %31 : vector<16x1xf32> to vector<16x32xf32>
    %33 = arith.mulf %28, %32 : vector<16x32xf32>
    %c0_16 = arith.constant 0 : index
    %c0_17 = arith.constant 0 : index
    %34 = vector.load %arg6[%c0_16, %c0_17] : memref<1x32xf32, #tpu.memory_space<vmem>>, vector<1x32xf32>
    %35 = vector.broadcast %34 : vector<1x32xf32> to vector<16x32xf32>
    %36 = arith.mulf %33, %35 : vector<16x32xf32>
    %c0_18 = arith.constant 0 : index
    %c0_19 = arith.constant 0 : index
    %37 = vector.load %arg7[%c0_18, %c0_19] : memref<1x32xf32, #tpu.memory_space<vmem>>, vector<1x32xf32>
    %38 = vector.broadcast %37 : vector<1x32xf32> to vector<16x32xf32>
    %39 = arith.addf %36, %38 : vector<16x32xf32>
    %c0_20 = arith.constant 0 : index
    %c0_21 = arith.constant 0 : index
    %40 = vector.load %arg8[%c0_20, %c0_21] : memref<16x32xf32, #tpu.memory_space<vmem>>, vector<16x32xf32>
    tpu.vector_store %arg8[%c0_20, %c0_21], %39 {strides = array<i32>} : memref<16x32xf32, #tpu.memory_space<vmem>>, vector<16x32xf32>,
    return
  }
  func.func @transform_0(%arg0: i32) -> (i32, i32) {
    %c0_i32 = arith.constant 0 : i32
    %c0_i32_0 = arith.constant 0 : i32
    return %arg0, %c0_i32 : i32, i32
  }
  func.func @transform_1(%arg0: i32) -> (i32, i32) {
    %c0_i32 = arith.constant 0 : i32
    %c0_i32_0 = arith.constant 0 : i32
    %c0_i32_1 = arith.constant 0 : i32
    return %c0_i32, %c0_i32_0 : i32, i32
  }
  func.func @transform_2(%arg0: i32) -> (i32, i32) {
    %c0_i32 = arith.constant 0 : i32
    %c0_i32_0 = arith.constant 0 : i32
    %c0_i32_1 = arith.constant 0 : i32
    return %c0_i32, %c0_i32_0 : i32, i32
  }
  func.func @transform_3(%arg0: i32) -> (i32, i32) {
    %c0_i32 = arith.constant 0 : i32
    %c0_i32_0 = arith.constant 0 : i32
    %c0_i32_1 = arith.constant 0 : i32
    return %c0_i32, %c0_i32_0 : i32, i32
  }
  func.func @transform_4(%arg0: i32) -> (i32, i32) {
    %c0_i32 = arith.constant 0 : i32
    %c0_i32_0 = arith.constant 0 : i32
    %c0_i32_1 = arith.constant 0 : i32
    return %c0_i32, %c0_i32_0 : i32, i32
  }
  func.func @transform_5(%arg0: i32) -> (i32, i32) {
    %c0_i32 = arith.constant 0 : i32
    %c0_i32_0 = arith.constant 0 : i32
    %c0_i32_1 = arith.constant 0 : i32
    return %c0_i32, %c0_i32_0 : i32, i32
  }
  func.func @transform_6(%arg0: i32) -> (i32, i32) {
    %c0_i32 = arith.constant 0 : i32
    %c0_i32_0 = arith.constant 0 : i32
    %c0_i32_1 = arith.constant 0 : i32
    return %c0_i32, %c0_i32_0 : i32, i32
  }
  func.func @transform_7(%arg0: i32) -> (i32, i32) {
    %c0_i32 = arith.constant 0 : i32
    %c0_i32_0 = arith.constant 0 : i32
    return %arg0, %c0_i32 : i32, i32
  }
}

module attributes {stable_mosaic.version = 11 : i64} {
  func.func @_linear_kernel(%arg0: i32, %arg1: i32, %arg2: i32, %arg3: memref<6x32xf32, #tpu.memory_space<vmem>>, %arg4: memref<32x32xbf16, #tpu.memory_space<vmem>>, %arg5: memref<1x32xf32, #tpu.memory_space<vmem>>, %arg6: memref<6x32xf32, #tpu.memory_space<vmem>>, %arg7: memref<6x32xf32, #tpu.memory_space<vmem>>) attributes {dimension_semantics = [#tpu.dimension_semantics<parallel>, #tpu.dimension_semantics<parallel>, #tpu.dimension_semantics<arbitrary>], iteration_bounds = array<i64: 1, 1, 1>, scalar_prefetch = 0 : i64, scratch_operands = 1 : i64, tpu.core_type = #tpu.core_type<tc>, window_params = [{transform_indices = @transform_0, window_bounds = array<i64: 6, 32>}, {transform_indices = @transform_1, window_bounds = array<i64: 32, 32>}, {transform_indices = @transform_2, window_bounds = array<i64: 1, 32>}, {transform_indices = @transform_3, window_bounds = array<i64: 6, 32>}]} {
    %c0_i32 = arith.constant 0 : i32
    %0 = arith.cmpi eq, %arg2, %c0_i32 : i32
    %1 = arith.extui %0 : i1 to i32
    %c0_i32_0 = arith.constant 0 : i32
    %2 = arith.cmpi ne, %1, %c0_i32_0 : i32
    scf.if %2 {
      %cst_10 = arith.constant 0.000000e+00 : f32
      %13 = vector.broadcast %cst_10 : f32 to vector<6x32xf32>
      %c0_11 = arith.constant 0 : index
      %c0_12 = arith.constant 0 : index
      %14 = vector.load %arg7[%c0_11, %c0_12] : memref<6x32xf32, #tpu.memory_space<vmem>>, vector<6x32xf32>
      tpu.vector_store %arg7[%c0_11, %c0_12], %13 {strides = array<i32>} : memref<6x32xf32, #tpu.memory_space<vmem>>, vector<6x32xf32>,
    } else {
    }
    %c0 = arith.constant 0 : index
    %c0_1 = arith.constant 0 : index
    %3 = vector.load %arg7[%c0, %c0_1] : memref<6x32xf32, #tpu.memory_space<vmem>>, vector<6x32xf32>
    %c0_2 = arith.constant 0 : index
    %c0_3 = arith.constant 0 : index
    %4 = vector.load %arg3[%c0_2, %c0_3] : memref<6x32xf32, #tpu.memory_space<vmem>>, vector<6x32xf32>
    %5 = arith.truncf %4 : vector<6x32xf32> to vector<6x32xbf16>
    %c0_4 = arith.constant 0 : index
    %c0_5 = arith.constant 0 : index
    %6 = vector.load %arg4[%c0_4, %c0_5] : memref<32x32xbf16, #tpu.memory_space<vmem>>, vector<32x32xbf16>
    %cst = arith.constant dense<0.000000e+00> : vector<6x32xf32>
    %7 = tpu.matmul %5, %6, %cst {dimension_numbers = #tpu.dot_dimension_numbers<[1], [0], [0], [1], [0, 0, 1, 1], [], []>} : vector<6x32xbf16>, vector<32x32xbf16>, vector<6x32xf32> -> vector<6x32xf32>
    %8 = arith.addf %3, %7 : vector<6x32xf32>
    %c0_6 = arith.constant 0 : index
    %c0_7 = arith.constant 0 : index
    %9 = vector.load %arg7[%c0_6, %c0_7] : memref<6x32xf32, #tpu.memory_space<vmem>>, vector<6x32xf32>
    tpu.vector_store %arg7[%c0_6, %c0_7], %8 {strides = array<i32>} : memref<6x32xf32, #tpu.memory_space<vmem>>, vector<6x32xf32>,
    %c0_i32_8 = arith.constant 0 : i32
    %10 = arith.cmpi eq, %arg2, %c0_i32_8 : i32
    %11 = arith.extui %10 : i1 to i32
    %c0_i32_9 = arith.constant 0 : i32
    %12 = arith.cmpi ne, %11, %c0_i32_9 : i32
    scf.if %12 {
      %c0_10 = arith.constant 0 : index
      %c0_11 = arith.constant 0 : index
      %13 = vector.load %arg7[%c0_10, %c0_11] : memref<6x32xf32, #tpu.memory_space<vmem>>, vector<6x32xf32>
      %c0_12 = arith.constant 0 : index
      %c0_13 = arith.constant 0 : index
      %14 = vector.load %arg5[%c0_12, %c0_13] : memref<1x32xf32, #tpu.memory_space<vmem>>, vector<1x32xf32>
      %15 = vector.broadcast %14 : vector<1x32xf32> to vector<6x32xf32>
      %16 = arith.addf %13, %15 : vector<6x32xf32>
      %cst_14 = arith.constant 0.000000e+00 : f32
      %17 = vector.broadcast %cst_14 : f32 to vector<6x32xf32>
      %18 = arith.maximumf %16, %17 : vector<6x32xf32>
      %c0_15 = arith.constant 0 : index
      %c0_16 = arith.constant 0 : index
      %19 = vector.load %arg6[%c0_15, %c0_16] : memref<6x32xf32, #tpu.memory_space<vmem>>, vector<6x32xf32>
      tpu.vector_store %arg6[%c0_15, %c0_16], %18 {strides = array<i32>} : memref<6x32xf32, #tpu.memory_space<vmem>>, vector<6x32xf32>,
    } else {
    }
    return
  }
  func.func @transform_0(%arg0: i32, %arg1: i32, %arg2: i32) -> (i32, i32) {
    %c0_i32 = arith.constant 0 : i32
    return %arg0, %arg2 : i32, i32
  }
  func.func @transform_1(%arg0: i32, %arg1: i32, %arg2: i32) -> (i32, i32) {
    %c0_i32 = arith.constant 0 : i32
    return %arg2, %arg1 : i32, i32
  }
  func.func @transform_2(%arg0: i32, %arg1: i32, %arg2: i32) -> (i32, i32) {
    %c0_i32 = arith.constant 0 : i32
    %c0_i32_0 = arith.constant 0 : i32
    return %c0_i32, %arg1 : i32, i32
  }
  func.func @transform_3(%arg0: i32, %arg1: i32, %arg2: i32) -> (i32, i32) {
    %c0_i32 = arith.constant 0 : i32
    return %arg0, %arg1 : i32, i32
  }
}

module attributes {stable_mosaic.version = 11 : i64} {
  func.func @_layernorm_kernel(%arg0: i32, %arg1: memref<6x32xf32, #tpu.memory_space<vmem>>, %arg2: memref<1x32xf32, #tpu.memory_space<vmem>>, %arg3: memref<1x32xf32, #tpu.memory_space<vmem>>, %arg4: memref<6x32xf32, #tpu.memory_space<vmem>>) attributes {dimension_semantics = [#tpu.dimension_semantics<parallel>], iteration_bounds = array<i64: 1>, scalar_prefetch = 0 : i64, scratch_operands = 0 : i64, tpu.core_type = #tpu.core_type<tc>, window_params = [{transform_indices = @transform_0, window_bounds = array<i64: 6, 32>}, {pipeline_mode = #tpu.pipeline_mode<synchronous>, transform_indices = @transform_1, window_bounds = array<i64: 1, 32>}, {pipeline_mode = #tpu.pipeline_mode<synchronous>, transform_indices = @transform_2, window_bounds = array<i64: 1, 32>}, {transform_indices = @transform_3, window_bounds = array<i64: 6, 32>}]} {
    %c0 = arith.constant 0 : index
    %c0_0 = arith.constant 0 : index
    %0 = vector.load %arg1[%c0, %c0_0] : memref<6x32xf32, #tpu.memory_space<vmem>>, vector<6x32xf32>
    %cst = arith.constant dense<0.000000e+00> : vector<6xf32>
    %1 = vector.multi_reduction <add>, %0, %cst [1] : vector<6x32xf32> to vector<6xf32>
    %2 = vector.shape_cast %1 : vector<6xf32> to vector<6x1xf32>
    %cst_1 = arith.constant 3.200000e+01 : f32
    %3 = vector.broadcast %cst_1 : f32 to vector<6x1xf32>
    %4 = arith.divf %2, %3 : vector<6x1xf32>
    %5 = vector.broadcast %4 : vector<6x1xf32> to vector<6x32xf32>
    %6 = arith.subf %0, %5 : vector<6x32xf32>
    %7 = arith.mulf %6, %6 : vector<6x32xf32>
    %cst_2 = arith.constant dense<0.000000e+00> : vector<6xf32>
    %8 = vector.multi_reduction <add>, %7, %cst_2 [1] : vector<6x32xf32> to vector<6xf32>
    %9 = vector.shape_cast %8 : vector<6xf32> to vector<6x1xf32>
    %cst_3 = arith.constant 3.200000e+01 : f32
    %10 = vector.broadcast %cst_3 : f32 to vector<6x1xf32>
    %11 = arith.divf %9, %10 : vector<6x1xf32>
    %12 = vector.broadcast %4 : vector<6x1xf32> to vector<6x32xf32>
    %13 = arith.subf %0, %12 : vector<6x32xf32>
    %cst_4 = arith.constant 9.99999974E-6 : f32
    %14 = vector.broadcast %cst_4 : f32 to vector<6x1xf32>
    %15 = arith.addf %11, %14 : vector<6x1xf32>
    %16 = math.rsqrt %15 : vector<6x1xf32>
    %17 = vector.broadcast %16 : vector<6x1xf32> to vector<6x32xf32>
    %18 = arith.mulf %13, %17 : vector<6x32xf32>
    %c0_5 = arith.constant 0 : index
    %c0_6 = arith.constant 0 : index
    %19 = vector.load %arg2[%c0_5, %c0_6] : memref<1x32xf32, #tpu.memory_space<vmem>>, vector<1x32xf32>
    %20 = vector.broadcast %19 : vector<1x32xf32> to vector<6x32xf32>
    %21 = arith.mulf %18, %20 : vector<6x32xf32>
    %c0_7 = arith.constant 0 : index
    %c0_8 = arith.constant 0 : index
    %22 = vector.load %arg3[%c0_7, %c0_8] : memref<1x32xf32, #tpu.memory_space<vmem>>, vector<1x32xf32>
    %23 = vector.broadcast %22 : vector<1x32xf32> to vector<6x32xf32>
    %24 = arith.addf %21, %23 : vector<6x32xf32>
    %c0_9 = arith.constant 0 : index
    %c0_10 = arith.constant 0 : index
    %25 = vector.load %arg4[%c0_9, %c0_10] : memref<6x32xf32, #tpu.memory_space<vmem>>, vector<6x32xf32>
    tpu.vector_store %arg4[%c0_9, %c0_10], %24 {strides = array<i32>} : memref<6x32xf32, #tpu.memory_space<vmem>>, vector<6x32xf32>,
    return
  }
  func.func @transform_0(%arg0: i32) -> (i32, i32) {
    %c0_i32 = arith.constant 0 : i32
    %c0_i32_0 = arith.constant 0 : i32
    return %arg0, %c0_i32 : i32, i32
  }
  func.func @transform_1(%arg0: i32) -> (i32, i32) {
    %c0_i32 = arith.constant 0 : i32
    %c0_i32_0 = arith.constant 0 : i32
    %c0_i32_1 = arith.constant 0 : i32
    return %c0_i32, %c0_i32_0 : i32, i32
  }
  func.func @transform_2(%arg0: i32) -> (i32, i32) {
    %c0_i32 = arith.constant 0 : i32
    %c0_i32_0 = arith.constant 0 : i32
    %c0_i32_1 = arith.constant 0 : i32
    return %c0_i32, %c0_i32_0 : i32, i32
  }
  func.func @transform_3(%arg0: i32) -> (i32, i32) {
    %c0_i32 = arith.constant 0 : i32
    %c0_i32_0 = arith.constant 0 : i32
    return %arg0, %c0_i32 : i32, i32
  }
}

module attributes {stable_mosaic.version = 11 : i64} {
  func.func @_linear_kernel(%arg0: i32, %arg1: i32, %arg2: i32, %arg3: memref<6x32xf32, #tpu.memory_space<vmem>>, %arg4: memref<32x64xbf16, #tpu.memory_space<vmem>>, %arg5: memref<1x64xf32, #tpu.memory_space<vmem>>, %arg6: memref<6x64xf32, #tpu.memory_space<vmem>>, %arg7: memref<6x64xf32, #tpu.memory_space<vmem>>) attributes {dimension_semantics = [#tpu.dimension_semantics<parallel>, #tpu.dimension_semantics<parallel>, #tpu.dimension_semantics<arbitrary>], iteration_bounds = array<i64: 1, 1, 1>, scalar_prefetch = 0 : i64, scratch_operands = 1 : i64, tpu.core_type = #tpu.core_type<tc>, window_params = [{transform_indices = @transform_0, window_bounds = array<i64: 6, 32>}, {transform_indices = @transform_1, window_bounds = array<i64: 32, 64>}, {transform_indices = @transform_2, window_bounds = array<i64: 1, 64>}, {transform_indices = @transform_3, window_bounds = array<i64: 6, 64>}]} {
    %c0_i32 = arith.constant 0 : i32
    %0 = arith.cmpi eq, %arg2, %c0_i32 : i32
    %1 = arith.extui %0 : i1 to i32
    %c0_i32_0 = arith.constant 0 : i32
    %2 = arith.cmpi ne, %1, %c0_i32_0 : i32
    scf.if %2 {
      %cst_10 = arith.constant 0.000000e+00 : f32
      %13 = vector.broadcast %cst_10 : f32 to vector<6x64xf32>
      %c0_11 = arith.constant 0 : index
      %c0_12 = arith.constant 0 : index
      %14 = vector.load %arg7[%c0_11, %c0_12] : memref<6x64xf32, #tpu.memory_space<vmem>>, vector<6x64xf32>
      tpu.vector_store %arg7[%c0_11, %c0_12], %13 {strides = array<i32>} : memref<6x64xf32, #tpu.memory_space<vmem>>, vector<6x64xf32>,
    } else {
    }
    %c0 = arith.constant 0 : index
    %c0_1 = arith.constant 0 : index
    %3 = vector.load %arg7[%c0, %c0_1] : memref<6x64xf32, #tpu.memory_space<vmem>>, vector<6x64xf32>
    %c0_2 = arith.constant 0 : index
    %c0_3 = arith.constant 0 : index
    %4 = vector.load %arg3[%c0_2, %c0_3] : memref<6x32xf32, #tpu.memory_space<vmem>>, vector<6x32xf32>
    %5 = arith.truncf %4 : vector<6x32xf32> to vector<6x32xbf16>
    %c0_4 = arith.constant 0 : index
    %c0_5 = arith.constant 0 : index
    %6 = vector.load %arg4[%c0_4, %c0_5] : memref<32x64xbf16, #tpu.memory_space<vmem>>, vector<32x64xbf16>
    %cst = arith.constant dense<0.000000e+00> : vector<6x64xf32>
    %7 = tpu.matmul %5, %6, %cst {dimension_numbers = #tpu.dot_dimension_numbers<[1], [0], [0], [1], [0, 0, 1, 1], [], []>} : vector<6x32xbf16>, vector<32x64xbf16>, vector<6x64xf32> -> vector<6x64xf32>
    %8 = arith.addf %3, %7 : vector<6x64xf32>
    %c0_6 = arith.constant 0 : index
    %c0_7 = arith.constant 0 : index
    %9 = vector.load %arg7[%c0_6, %c0_7] : memref<6x64xf32, #tpu.memory_space<vmem>>, vector<6x64xf32>
    tpu.vector_store %arg7[%c0_6, %c0_7], %8 {strides = array<i32>} : memref<6x64xf32, #tpu.memory_space<vmem>>, vector<6x64xf32>,
    %c0_i32_8 = arith.constant 0 : i32
    %10 = arith.cmpi eq, %arg2, %c0_i32_8 : i32
    %11 = arith.extui %10 : i1 to i32
    %c0_i32_9 = arith.constant 0 : i32
    %12 = arith.cmpi ne, %11, %c0_i32_9 : i32
    scf.if %12 {
      %c0_10 = arith.constant 0 : index
      %c0_11 = arith.constant 0 : index
      %13 = vector.load %arg7[%c0_10, %c0_11] : memref<6x64xf32, #tpu.memory_space<vmem>>, vector<6x64xf32>
      %c0_12 = arith.constant 0 : index
      %c0_13 = arith.constant 0 : index
      %14 = vector.load %arg5[%c0_12, %c0_13] : memref<1x64xf32, #tpu.memory_space<vmem>>, vector<1x64xf32>
      %15 = vector.broadcast %14 : vector<1x64xf32> to vector<6x64xf32>
      %16 = arith.addf %13, %15 : vector<6x64xf32>
      %c0_14 = arith.constant 0 : index
      %c0_15 = arith.constant 0 : index
      %17 = vector.load %arg6[%c0_14, %c0_15] : memref<6x64xf32, #tpu.memory_space<vmem>>, vector<6x64xf32>
      tpu.vector_store %arg6[%c0_14, %c0_15], %16 {strides = array<i32>} : memref<6x64xf32, #tpu.memory_space<vmem>>, vector<6x64xf32>,
    } else {
    }
    return
  }
  func.func @transform_0(%arg0: i32, %arg1: i32, %arg2: i32) -> (i32, i32) {
    %c0_i32 = arith.constant 0 : i32
    return %arg0, %arg2 : i32, i32
  }
  func.func @transform_1(%arg0: i32, %arg1: i32, %arg2: i32) -> (i32, i32) {
    %c0_i32 = arith.constant 0 : i32
    return %arg2, %arg1 : i32, i32
  }
  func.func @transform_2(%arg0: i32, %arg1: i32, %arg2: i32) -> (i32, i32) {
    %c0_i32 = arith.constant 0 : i32
    %c0_i32_0 = arith.constant 0 : i32
    return %c0_i32, %arg1 : i32, i32
  }
  func.func @transform_3(%arg0: i32, %arg1: i32, %arg2: i32) -> (i32, i32) {
    %c0_i32 = arith.constant 0 : i32
    return %arg0, %arg1 : i32, i32
  }
}

module attributes {stable_mosaic.version = 11 : i64} {
  func.func @_linear_kernel(%arg0: i32, %arg1: i32, %arg2: i32, %arg3: memref<2x32xf32, #tpu.memory_space<vmem>>, %arg4: memref<32x32xbf16, #tpu.memory_space<vmem>>, %arg5: memref<1x32xf32, #tpu.memory_space<vmem>>, %arg6: memref<2x32xf32, #tpu.memory_space<vmem>>, %arg7: memref<2x32xf32, #tpu.memory_space<vmem>>) attributes {dimension_semantics = [#tpu.dimension_semantics<parallel>, #tpu.dimension_semantics<parallel>, #tpu.dimension_semantics<arbitrary>], iteration_bounds = array<i64: 1, 1, 1>, scalar_prefetch = 0 : i64, scratch_operands = 1 : i64, tpu.core_type = #tpu.core_type<tc>, window_params = [{transform_indices = @transform_0, window_bounds = array<i64: 2, 32>}, {transform_indices = @transform_1, window_bounds = array<i64: 32, 32>}, {transform_indices = @transform_2, window_bounds = array<i64: 1, 32>}, {transform_indices = @transform_3, window_bounds = array<i64: 2, 32>}]} {
    %c0_i32 = arith.constant 0 : i32
    %0 = arith.cmpi eq, %arg2, %c0_i32 : i32
    %1 = arith.extui %0 : i1 to i32
    %c0_i32_0 = arith.constant 0 : i32
    %2 = arith.cmpi ne, %1, %c0_i32_0 : i32
    scf.if %2 {
      %cst_10 = arith.constant 0.000000e+00 : f32
      %13 = vector.broadcast %cst_10 : f32 to vector<2x32xf32>
      %c0_11 = arith.constant 0 : index
      %c0_12 = arith.constant 0 : index
      %14 = vector.load %arg7[%c0_11, %c0_12] : memref<2x32xf32, #tpu.memory_space<vmem>>, vector<2x32xf32>
      tpu.vector_store %arg7[%c0_11, %c0_12], %13 {strides = array<i32>} : memref<2x32xf32, #tpu.memory_space<vmem>>, vector<2x32xf32>,
    } else {
    }
    %c0 = arith.constant 0 : index
    %c0_1 = arith.constant 0 : index
    %3 = vector.load %arg7[%c0, %c0_1] : memref<2x32xf32, #tpu.memory_space<vmem>>, vector<2x32xf32>
    %c0_2 = arith.constant 0 : index
    %c0_3 = arith.constant 0 : index
    %4 = vector.load %arg3[%c0_2, %c0_3] : memref<2x32xf32, #tpu.memory_space<vmem>>, vector<2x32xf32>
    %5 = arith.truncf %4 : vector<2x32xf32> to vector<2x32xbf16>
    %c0_4 = arith.constant 0 : index
    %c0_5 = arith.constant 0 : index
    %6 = vector.load %arg4[%c0_4, %c0_5] : memref<32x32xbf16, #tpu.memory_space<vmem>>, vector<32x32xbf16>
    %cst = arith.constant dense<0.000000e+00> : vector<2x32xf32>
    %7 = tpu.matmul %5, %6, %cst {dimension_numbers = #tpu.dot_dimension_numbers<[1], [0], [0], [1], [0, 0, 1, 1], [], []>} : vector<2x32xbf16>, vector<32x32xbf16>, vector<2x32xf32> -> vector<2x32xf32>
    %8 = arith.addf %3, %7 : vector<2x32xf32>
    %c0_6 = arith.constant 0 : index
    %c0_7 = arith.constant 0 : index
    %9 = vector.load %arg7[%c0_6, %c0_7] : memref<2x32xf32, #tpu.memory_space<vmem>>, vector<2x32xf32>
    tpu.vector_store %arg7[%c0_6, %c0_7], %8 {strides = array<i32>} : memref<2x32xf32, #tpu.memory_space<vmem>>, vector<2x32xf32>,
    %c0_i32_8 = arith.constant 0 : i32
    %10 = arith.cmpi eq, %arg2, %c0_i32_8 : i32
    %11 = arith.extui %10 : i1 to i32
    %c0_i32_9 = arith.constant 0 : i32
    %12 = arith.cmpi ne, %11, %c0_i32_9 : i32
    scf.if %12 {
      %c0_10 = arith.constant 0 : index
      %c0_11 = arith.constant 0 : index
      %13 = vector.load %arg7[%c0_10, %c0_11] : memref<2x32xf32, #tpu.memory_space<vmem>>, vector<2x32xf32>
      %c0_12 = arith.constant 0 : index
      %c0_13 = arith.constant 0 : index
      %14 = vector.load %arg5[%c0_12, %c0_13] : memref<1x32xf32, #tpu.memory_space<vmem>>, vector<1x32xf32>
      %15 = vector.broadcast %14 : vector<1x32xf32> to vector<2x32xf32>
      %16 = arith.addf %13, %15 : vector<2x32xf32>
      %17 = math.tanh %16 : vector<2x32xf32>
      %c0_14 = arith.constant 0 : index
      %c0_15 = arith.constant 0 : index
      %18 = vector.load %arg6[%c0_14, %c0_15] : memref<2x32xf32, #tpu.memory_space<vmem>>, vector<2x32xf32>
      tpu.vector_store %arg6[%c0_14, %c0_15], %17 {strides = array<i32>} : memref<2x32xf32, #tpu.memory_space<vmem>>, vector<2x32xf32>,
    } else {
    }
    return
  }
  func.func @transform_0(%arg0: i32, %arg1: i32, %arg2: i32) -> (i32, i32) {
    %c0_i32 = arith.constant 0 : i32
    return %arg0, %arg2 : i32, i32
  }
  func.func @transform_1(%arg0: i32, %arg1: i32, %arg2: i32) -> (i32, i32) {
    %c0_i32 = arith.constant 0 : i32
    return %arg2, %arg1 : i32, i32
  }
  func.func @transform_2(%arg0: i32, %arg1: i32, %arg2: i32) -> (i32, i32) {
    %c0_i32 = arith.constant 0 : i32
    %c0_i32_0 = arith.constant 0 : i32
    return %c0_i32, %arg1 : i32, i32
  }
  func.func @transform_3(%arg0: i32, %arg1: i32, %arg2: i32) -> (i32, i32) {
    %c0_i32 = arith.constant 0 : i32
    return %arg0, %arg1 : i32, i32
  }
}

module attributes {stable_mosaic.version = 11 : i64} {
  func.func @_linear_kernel(%arg0: i32, %arg1: i32, %arg2: i32, %arg3: memref<2x32xf32, #tpu.memory_space<vmem>>, %arg4: memref<32x2xbf16, #tpu.memory_space<vmem>>, %arg5: memref<1x2xf32, #tpu.memory_space<vmem>>, %arg6: memref<2x2xf32, #tpu.memory_space<vmem>>, %arg7: memref<2x2xf32, #tpu.memory_space<vmem>>) attributes {dimension_semantics = [#tpu.dimension_semantics<parallel>, #tpu.dimension_semantics<parallel>, #tpu.dimension_semantics<arbitrary>], iteration_bounds = array<i64: 1, 1, 1>, scalar_prefetch = 0 : i64, scratch_operands = 1 : i64, tpu.core_type = #tpu.core_type<tc>, window_params = [{transform_indices = @transform_0, window_bounds = array<i64: 2, 32>}, {transform_indices = @transform_1, window_bounds = array<i64: 32, 2>}, {transform_indices = @transform_2, window_bounds = array<i64: 1, 2>}, {transform_indices = @transform_3, window_bounds = array<i64: 2, 2>}]} {
    %c0_i32 = arith.constant 0 : i32
    %0 = arith.cmpi eq, %arg2, %c0_i32 : i32
    %1 = arith.extui %0 : i1 to i32
    %c0_i32_0 = arith.constant 0 : i32
    %2 = arith.cmpi ne, %1, %c0_i32_0 : i32
    scf.if %2 {
      %cst_10 = arith.constant 0.000000e+00 : f32
      %13 = vector.broadcast %cst_10 : f32 to vector<2x2xf32>
      %c0_11 = arith.constant 0 : index
      %c0_12 = arith.constant 0 : index
      %14 = vector.load %arg7[%c0_11, %c0_12] : memref<2x2xf32, #tpu.memory_space<vmem>>, vector<2x2xf32>
      tpu.vector_store %arg7[%c0_11, %c0_12], %13 {strides = array<i32>} : memref<2x2xf32, #tpu.memory_space<vmem>>, vector<2x2xf32>,
    } else {
    }
    %c0 = arith.constant 0 : index
    %c0_1 = arith.constant 0 : index
    %3 = vector.load %arg7[%c0, %c0_1] : memref<2x2xf32, #tpu.memory_space<vmem>>, vector<2x2xf32>
    %c0_2 = arith.constant 0 : index
    %c0_3 = arith.constant 0 : index
    %4 = vector.load %arg3[%c0_2, %c0_3] : memref<2x32xf32, #tpu.memory_space<vmem>>, vector<2x32xf32>
    %5 = arith.truncf %4 : vector<2x32xf32> to vector<2x32xbf16>
    %c0_4 = arith.constant 0 : index
    %c0_5 = arith.constant 0 : index
    %6 = vector.load %arg4[%c0_4, %c0_5] : memref<32x2xbf16, #tpu.memory_space<vmem>>, vector<32x2xbf16>
    %cst = arith.constant dense<0.000000e+00> : vector<2x2xf32>
    %7 = tpu.matmul %5, %6, %cst {dimension_numbers = #tpu.dot_dimension_numbers<[1], [0], [0], [1], [0, 0, 1, 1], [], []>} : vector<2x32xbf16>, vector<32x2xbf16>, vector<2x2xf32> -> vector<2x2xf32>
    %8 = arith.addf %3, %7 : vector<2x2xf32>
    %c0_6 = arith.constant 0 : index
    %c0_7 = arith.constant 0 : index
    %9 = vector.load %arg7[%c0_6, %c0_7] : memref<2x2xf32, #tpu.memory_space<vmem>>, vector<2x2xf32>
    tpu.vector_store %arg7[%c0_6, %c0_7], %8 {strides = array<i32>} : memref<2x2xf32, #tpu.memory_space<vmem>>, vector<2x2xf32>,
    %c0_i32_8 = arith.constant 0 : i32
    %10 = arith.cmpi eq, %arg2, %c0_i32_8 : i32
    %11 = arith.extui %10 : i1 to i32
    %c0_i32_9 = arith.constant 0 : i32
    %12 = arith.cmpi ne, %11, %c0_i32_9 : i32
    scf.if %12 {
      %c0_10 = arith.constant 0 : index
      %c0_11 = arith.constant 0 : index
      %13 = vector.load %arg7[%c0_10, %c0_11] : memref<2x2xf32, #tpu.memory_space<vmem>>, vector<2x2xf32>
      %c0_12 = arith.constant 0 : index
      %c0_13 = arith.constant 0 : index
      %14 = vector.load %arg5[%c0_12, %c0_13] : memref<1x2xf32, #tpu.memory_space<vmem>>, vector<1x2xf32>
      %15 = vector.broadcast %14 : vector<1x2xf32> to vector<2x2xf32>
      %16 = arith.addf %13, %15 : vector<2x2xf32>
      %c0_14 = arith.constant 0 : index
      %c0_15 = arith.constant 0 : index
      %17 = vector.load %arg6[%c0_14, %c0_15] : memref<2x2xf32, #tpu.memory_space<vmem>>, vector<2x2xf32>
      tpu.vector_store %arg6[%c0_14, %c0_15], %16 {strides = array<i32>} : memref<2x2xf32, #tpu.memory_space<vmem>>, vector<2x2xf32>,
    } else {
    }
    return
  }
  func.func @transform_0(%arg0: i32, %arg1: i32, %arg2: i32) -> (i32, i32) {
    %c0_i32 = arith.constant 0 : i32
    return %arg0, %arg2 : i32, i32
  }
  func.func @transform_1(%arg0: i32, %arg1: i32, %arg2: i32) -> (i32, i32) {
    %c0_i32 = arith.constant 0 : i32
    return %arg2, %arg1 : i32, i32
  }
  func.func @transform_2(%arg0: i32, %arg1: i32, %arg2: i32) -> (i32, i32) {
    %c0_i32 = arith.constant 0 : i32
    %c0_i32_0 = arith.constant 0 : i32
    return %c0_i32, %arg1 : i32, i32
  }
  func.func @transform_3(%arg0: i32, %arg1: i32, %arg2: i32) -> (i32, i32) {
    %c0_i32 = arith.constant 0 : i32
    return %arg0, %arg1 : i32, i32
  }
}

</mosaic_0001>

<llo_original>
// kernel: bert_forward.14
$region0: #{bert_forward.14}
  #allocation0 [shape = 'u32[]', space=smem, size = 0x4, offset = 0x4, fixed_abs, tag = 'smem constant byte address 0x4 - core index']
  #allocation1 [shape = 'u32[144,128]{1,0:T(1,128)}', space=vmem, size = 0x12000, scoped, tag = 'internal scratch']
  %s0 = inlined_call_operand.vmem [shape: f32[6,32], index: 0, kind: input, shape index: {}]
  %s1 = inlined_call_operand.vmem [shape: f32[1,32], index: 1, kind: input, shape index: {}]
  %s2 = inlined_call_operand.vmem [shape: f32[1,32], index: 2, kind: input, shape index: {}]
  %s3 = inlined_call_operand.vmem [shape: f32[6,32], index: 3, kind: output, shape index: {}]
  %s4 = sld [smem:[#allocation0]]
  $region22: #{bert_forward.14} parent=0
    _
  %s6 = ssub.s32 1, %s4
  %s7 = scalar_select 0, %s6, %s4
  // Predicated region
  $region2: #{bert_forward.14} parent=0 // pred_check
    _
  $region3: #{bert_forward.14} parent=0 // pred_check_branch
    %9 = sbr.rel (0) target = $region5
  $region4: #{bert_forward.14} parent=0 // pred_region
    _
  $region5: #{bert_forward.14} parent=0 // pred_fallthru
    _
  // Predicated region
  $region6: #{bert_forward.14} parent=0 // pred_check
    _
  $region7: #{bert_forward.14} parent=0 // pred_check_branch
    %11 = sbr.rel (0) target = $region9
  $region8: #{bert_forward.14} parent=0 // pred_region
    _
  $region9: #{bert_forward.14} parent=0 // pred_fallthru
    _
  // Predicated region
  $region10: #{bert_forward.14} parent=0 // pred_check
    _
  $region11: #{bert_forward.14} parent=0 // pred_check_branch
    %13 = sbr.rel (0) target = $region13
  $region12: #{bert_forward.14} parent=0 // pred_region
    _
  $region13: #{bert_forward.14} parent=0 // pred_fallthru
    _
  %v14 = vld [vmem:[%s0] sm:$0x3f]
  %vm15 = vcmask 259072
  %v16 = vsel %vm15, %v14, 0.0
  %17 = vadd.xlane.f32.xlu0 %v16
  %v18 = vpop.xlane.xlu0 %17
  %v19 = vrcp.pop 32.0
  %v20 = vmul.f32 %v18, %v19
  %v21 = vsub.f32 %v14, %v20
  %v22 = vmul.f32 %v21, %v21
  %v23 = vsel %vm15, %v22, 0.0
  %24 = vadd.xlane.f32.xlu0 %v23
  %v25 = vpop.xlane.xlu0 %24
  %v26 = vmul.f32 %v25, %v19
  %v27 = vadd.f32 %v26, 1e-05
  %v28 = vrsqrt.pop %v27
  %v29 = vmul.f32 %v21, %v28
  %v30 = vld [vmem:[%s1] sm:$0x1]
  %v32 = vlaneseq
  %v33 = vshrl.u32 %v32, 7
  %v34 = vsub.s32 0, %v33
  %v35 = vrot.slane %v30, %v34
  %v37 = vmul.f32 %v29, %v35
  %v38 = vld [vmem:[%s2] sm:$0x1]
  %v40 = vlaneseq
  %v41 = vshrl.u32 %v40, 7
  %v42 = vsub.s32 0, %v41
  %v43 = vrot.slane %v38, %v42
  %v45 = vadd.f32 %v37, %v43
  %46 = vst.msk [vmem:[%s3] sm:$0x3f] %vm15, %v45
  // Predicated region
  $region14: #{bert_forward.14} parent=0 // pred_check
    _
  $region15: #{bert_forward.14} parent=0 // pred_check_branch
    %48 = sbr.rel (0) target = $region17
  $region16: #{bert_forward.14} parent=0 // pred_region
    _
  $region17: #{bert_forward.14} parent=0 // pred_fallthru
    _
  // Predicated region
  $region18: #{bert_forward.14} parent=0 // pred_check
    _
  $region19: #{bert_forward.14} parent=0 // pred_check_branch
    %50 = sbr.rel (0) target = $region21
  $region20: #{bert_forward.14} parent=0 // pred_region
    _
  $region21: #{bert_forward.14} parent=0 // pred_fallthru
    _

// kernel: bert_forward.13
$region0: #{bert_forward.13}
  #allocation0 [shape = 'u32[]', space=smem, size = 0x4, offset = 0x4, fixed_abs, tag = 'smem constant byte address 0x4 - core index']
  #allocation1 [shape = 'u32[144,128]{1,0:T(1,128)}', space=vmem, size = 0x12000, scoped, tag = 'internal scratch']
  #allocation2 [shape = 'f32[6,32]{1,0:T(8,128)}', space=vmem, size = 0x1000, scoped, tag = 'scratch operand']
  %s0 = inlined_call_operand.vmem [shape: f32[6,32], index: 0, kind: input, shape index: {}]
  %s1 = inlined_call_operand.vmem [shape: bf16[32,32], index: 1, kind: input, shape index: {}]
  %s2 = inlined_call_operand.vmem [shape: f32[1,32], index: 2, kind: input, shape index: {}]
  %s3 = inlined_call_operand.vmem [shape: f32[6,32], index: 3, kind: output, shape index: {}]
  %s4 = sld [smem:[#allocation0]]
  $region30: #{bert_forward.13} parent=0
    _
  %s6 = ssub.s32 1, %s4
  %s7 = scalar_select 0, %s6, %s4
  // Predicated region
  $region2: #{bert_forward.13} parent=0 // pred_check
    _
  $region3: #{bert_forward.13} parent=0 // pred_check_branch
    %9 = sbr.rel (0) target = $region5
  $region4: #{bert_forward.13} parent=0 // pred_region
    _
  $region5: #{bert_forward.13} parent=0 // pred_fallthru
    _
  // Predicated region
  $region6: #{bert_forward.13} parent=0 // pred_check
    _
  $region7: #{bert_forward.13} parent=0 // pred_check_branch
    %11 = sbr.rel (0) target = $region9
  $region8: #{bert_forward.13} parent=0 // pred_region
    _
  $region9: #{bert_forward.13} parent=0 // pred_fallthru
    _
  // Predicated region
  $region10: #{bert_forward.13} parent=0 // pred_check
    _
  $region11: #{bert_forward.13} parent=0 // pred_check_branch
    %13 = sbr.rel (0) target = $region13
  $region12: #{bert_forward.13} parent=0 // pred_region
    _
  $region13: #{bert_forward.13} parent=0 // pred_fallthru
    _
  %p15 = scmp.eq.s32.totalorder 0, 0
  // Predicated region
  $region14: #{bert_forward.13} parent=0 // pred_check
    %p16 = pneg %p15
  $region15: #{bert_forward.13} parent=0 // pred_check_branch
    %18 = sbr.rel (%p16) target = $region17
  $region16: #{bert_forward.13} parent=0 // pred_region
    %vm19 = vcmask 259072
    %20 = vst.msk [vmem:[#allocation2] sm:$0x3f] %vm19, 0.0
  $region17: #{bert_forward.13} parent=0 // pred_fallthru
    _
  %v21 = vld [vmem:[#allocation2] sm:$0x3f]
  %v22 = vld [vmem:[%s0] sm:$0x3f]
  %v23 = vpack.c.bf16 %v22, %v22
  %v24 = vld [vmem:[%s1] sm:$0xf]
  %v25 = vld [vmem:[%s1 + $0x4] sm:$0xf]
  %v26 = vld [vmem:[%s1 + $0x8] sm:$0xf]
  %v27 = vld [vmem:[%s1 + $0xc] sm:$0xf]
  %v32 = vunpack.c.l.b16 %v24
  %v33 = vunpack.c.l.b16 %v25
  %v34 = vunpack.c.l.b16 %v26
  %v35 = vunpack.c.l.b16 %v27
  %v36 = vpack.c.b16 %v33, %v32
  %v37 = vpack.c.b16 %v35, %v34
  %vm40 = vcmask 261120
  %v42 = vsel %vm40, %v23, 0
  %44 = vmatprep.subr.bf16.mxu0 0
  %45 = vmatpush1.bf16.msra.mxu0 %v36
  %46 = vmatprep.subr.bf16.mxu0 0
  %47 = vmatpush1.bf16.msra.mxu0 %v37
  %48 = vmatprep.subr.bf16.mxu0 0
  %49 = vmatpush1.bf16.msra.mxu0 0
  %50 = vmatprep.subr.bf16.mxu0 0
  %51 = vmatpush1.bf16.msra.mxu0 0
  %52 = vmatprep.subr.bf16.mxu0 0
  %53 = vmatpush1.bf16.msra.mxu0 0
  %54 = vmatprep.subr.bf16.mxu0 0
  %55 = vmatpush1.bf16.msra.mxu0 0
  %56 = vmatprep.subr.bf16.mxu0 0
  %57 = vmatpush1.bf16.msra.mxu0 0
  %58 = vmatprep.subr.bf16.mxu0 0
  %59 = vmatpush1.bf16.msra.mxu0 0
  %60 = vmatprep.subr.bf16.mxu0 0
  %61 = vmatpush1.bf16.msra.mxu0 0
  %62 = vmatprep.subr.bf16.mxu0 0
  %63 = vmatpush1.bf16.msra.mxu0 0
  %64 = vmatprep.subr.bf16.mxu0 0
  %65 = vmatpush1.bf16.msra.mxu0 0
  %66 = vmatprep.subr.bf16.mxu0 0
  %67 = vmatpush1.bf16.msra.mxu0 0
  %68 = vmatprep.subr.bf16.mxu0 0
  %69 = vmatpush1.bf16.msra.mxu0 0
  %70 = vmatprep.subr.bf16.mxu0 0
  %71 = vmatpush1.bf16.msra.mxu0 0
  %72 = vmatprep.subr.bf16.mxu0 0
  %73 = vmatpush1.bf16.msra.mxu0 0
  %74 = vmatprep.subr.bf16.mxu0 0
  %75 = vmatpush1.bf16.msra.mxu0 0
  %76 = vmatprep.mubr.bf16.mxu0 0
  %77 = vmatmul.mubr.bf16.gmra.mrb[0].mxu0 %v42
  %v78 = vpop.f32.mrb[0].mxu0
  %v79 = vadd.f32 0.0, %v78
  %v80 = vpop.f32.mrb[0].mxu0
  %v81 = vpop.f32.mrb[0].mxu0
  %v82 = vpop.f32.mrb[0].mxu0
  %83 = vdwg.mxu0
  %v84 = vadd.f32 %v21, %v79
  %vm85 = vcmask 259072
  %86 = vst.msk [vmem:[#allocation2] sm:$0x3f] %vm85, %v84
  // Predicated region
  $region18: #{bert_forward.13} parent=0 // pred_check
    %p87 = pneg %p15
  $region19: #{bert_forward.13} parent=0 // pred_check_branch
    %89 = sbr.rel (%p87) target = $region21
  $region20: #{bert_forward.13} parent=0 // pred_region
    %v90 = vld [vmem:[#allocation2] sm:$0x3f]
    %v91 = vld [vmem:[%s2] sm:$0x1]
    %v93 = vlaneseq
    %v94 = vshrl.u32 %v93, 7
    %v95 = vsub.s32 0, %v94
    %v96 = vrot.slane %v91, %v95
    %v98 = vadd.f32 %v90, %v96
    %v99 = vmax.f32 %v98, 0.0
    %100 = vst.msk [vmem:[%s3] sm:$0x3f] %vm85, %v99
  $region21: #{bert_forward.13} parent=0 // pred_fallthru
    _
  // Predicated region
  $region22: #{bert_forward.13} parent=0 // pred_check
    _
  $region23: #{bert_forward.13} parent=0 // pred_check_branch
    %102 = sbr.rel (0) target = $region25
  $region24: #{bert_forward.13} parent=0 // pred_region
    _
  $region25: #{bert_forward.13} parent=0 // pred_fallthru
    _
  // Predicated region
  $region26: #{bert_forward.13} parent=0 // pred_check
    _
  $region27: #{bert_forward.13} parent=0 // pred_check_branch
    %104 = sbr.rel (0) target = $region29
  $region28: #{bert_forward.13} parent=0 // pred_region
    _
  $region29: #{bert_forward.13} parent=0 // pred_fallthru
    _

// kernel: bert_forward.10
$region0: #{bert_forward.10}
  #allocation0 [shape = 'u32[]', space=smem, size = 0x4, offset = 0x4, fixed_abs, tag = 'smem constant byte address 0x4 - core index']
  #allocation1 [shape = 'u32[144,128]{1,0:T(1,128)}', space=vmem, size = 0x12000, scoped, tag = 'internal scratch']
  %s0 = inlined_call_operand.vmem [shape: f32[16,32], index: 0, kind: input, shape index: {}]
  %s1 = inlined_call_operand.vmem [shape: bf16[32,64], index: 1, kind: input, shape index: {}]
  %s2 = inlined_call_operand.vmem [shape: f32[1,64], index: 2, kind: input, shape index: {}]
  %s3 = inlined_call_operand.vmem [shape: bf16[64,32], index: 3, kind: input, shape index: {}]
  %s4 = inlined_call_operand.vmem [shape: f32[1,32], index: 4, kind: input, shape index: {}]
  %s5 = inlined_call_operand.vmem [shape: f32[1,32], index: 5, kind: input, shape index: {}]
  %s6 = inlined_call_operand.vmem [shape: f32[1,32], index: 6, kind: input, shape index: {}]
  %s7 = inlined_call_operand.vmem [shape: f32[16,32], index: 7, kind: output, shape index: {}]
  %s8 = sld [smem:[#allocation0]]
  $region38: #{bert_forward.10} parent=0
    _
  %s10 = ssub.s32 1, %s8
  %s11 = scalar_select 0, %s10, %s8
  // Predicated region
  $region2: #{bert_forward.10} parent=0 // pred_check
    _
  $region3: #{bert_forward.10} parent=0 // pred_check_branch
    %13 = sbr.rel (0) target = $region5
  $region4: #{bert_forward.10} parent=0 // pred_region
    _
  $region5: #{bert_forward.10} parent=0 // pred_fallthru
    _
  // Predicated region
  $region6: #{bert_forward.10} parent=0 // pred_check
    _
  $region7: #{bert_forward.10} parent=0 // pred_check_branch
    %15 = sbr.rel (0) target = $region9
  $region8: #{bert_forward.10} parent=0 // pred_region
    _
  $region9: #{bert_forward.10} parent=0 // pred_fallthru
    _
  // Predicated region
  $region10: #{bert_forward.10} parent=0 // pred_check
    _
  $region11: #{bert_forward.10} parent=0 // pred_check_branch
    %17 = sbr.rel (0) target = $region13
  $region12: #{bert_forward.10} parent=0 // pred_region
    _
  $region13: #{bert_forward.10} parent=0 // pred_fallthru
    _
  // Predicated region
  $region14: #{bert_forward.10} parent=0 // pred_check
    _
  $region15: #{bert_forward.10} parent=0 // pred_check_branch
    %19 = sbr.rel (0) target = $region17
  $region16: #{bert_forward.10} parent=0 // pred_region
    _
  $region17: #{bert_forward.10} parent=0 // pred_fallthru
    _
  // Predicated region
  $region18: #{bert_forward.10} parent=0 // pred_check
    _
  $region19: #{bert_forward.10} parent=0 // pred_check_branch
    %21 = sbr.rel (0) target = $region21
  $region20: #{bert_forward.10} parent=0 // pred_region
    _
  $region21: #{bert_forward.10} parent=0 // pred_fallthru
    _
  // Predicated region
  $region22: #{bert_forward.10} parent=0 // pred_check
    _
  $region23: #{bert_forward.10} parent=0 // pred_check_branch
    %23 = sbr.rel (0) target = $region25
  $region24: #{bert_forward.10} parent=0 // pred_region
    _
  $region25: #{bert_forward.10} parent=0 // pred_fallthru
    _
  // Predicated region
  $region26: #{bert_forward.10} parent=0 // pred_check
    _
  $region27: #{bert_forward.10} parent=0 // pred_check_branch
    %25 = sbr.rel (0) target = $region29
  $region28: #{bert_forward.10} parent=0 // pred_region
    _
  $region29: #{bert_forward.10} parent=0 // pred_fallthru
    _
  %v27 = vld [vmem:[%s0] sm:$0xff]
  %v28 = vld [vmem:[%s0 + $0x8] sm:$0xff]
  %v29 = vpack.c.bf16 %v28, %v27
  %v30 = vld [vmem:[%s1] sm:$0xf]
  %v31 = vld [vmem:[%s1 + $0x4] sm:$0xf]
  %v32 = vld [vmem:[%s1 + $0x8] sm:$0xf]
  %v33 = vld [vmem:[%s1 + $0xc] sm:$0xf]
  %v34 = vld [vmem:[%s2] sm:$0x1]
  %v36 = vlaneseq
  %v37 = vshrl.u32 %v36, 7
  %v38 = vsub.s32 0, %v37
  %v39 = vrot.slane %v34, %v38
  %v45 = vunpack.c.l.b16 %v30
  %v46 = vunpack.c.l.b16 %v31
  %v47 = vunpack.c.l.b16 %v32
  %v48 = vunpack.c.l.b16 %v33
  %v49 = vpack.c.b16 %v46, %v45
  %v50 = vpack.c.b16 %v48, %v47
  %vm53 = vcmask 261120
  %v55 = vsel %vm53, %v29, 0
  %57 = vmatprep.subr.bf16.mxu0 0
  %58 = vmatpush1.bf16.msra.mxu0 %v49
  %59 = vmatprep.subr.bf16.mxu0 0
  %60 = vmatpush1.bf16.msra.mxu0 %v50
  %61 = vmatprep.subr.bf16.mxu0 0
  %62 = vmatpush1.bf16.msra.mxu0 0
  %63 = vmatprep.subr.bf16.mxu0 0
  %64 = vmatpush1.bf16.msra.mxu0 0
  %65 = vmatprep.subr.bf16.mxu0 0
  %66 = vmatpush1.bf16.msra.mxu0 0
  %67 = vmatprep.subr.bf16.mxu0 0
  %68 = vmatpush1.bf16.msra.mxu0 0
  %69 = vmatprep.subr.bf16.mxu0 0
  %70 = vmatpush1.bf16.msra.mxu0 0
  %71 = vmatprep.subr.bf16.mxu0 0
  %72 = vmatpush1.bf16.msra.mxu0 0
  %73 = vmatprep.subr.bf16.mxu0 0
  %74 = vmatpush1.bf16.msra.mxu0 0
  %75 = vmatprep.subr.bf16.mxu0 0
  %76 = vmatpush1.bf16.msra.mxu0 0
  %77 = vmatprep.subr.bf16.mxu0 0
  %78 = vmatpush1.bf16.msra.mxu0 0
  %79 = vmatprep.subr.bf16.mxu0 0
  %80 = vmatpush1.bf16.msra.mxu0 0
  %81 = vmatprep.subr.bf16.mxu0 0
  %82 = vmatpush1.bf16.msra.mxu0 0
  %83 = vmatprep.subr.bf16.mxu0 0
  %84 = vmatpush1.bf16.msra.mxu0 0
  %85 = vmatprep.subr.bf16.mxu0 0
  %86 = vmatpush1.bf16.msra.mxu0 0
  %87 = vmatprep.subr.bf16.mxu0 0
  %88 = vmatpush1.bf16.msra.mxu0 0
  %89 = vmatprep.mubr.bf16.mxu0 0
  %90 = vmatmul.mubr.bf16.gmra.mrb[0].mxu0 %v55
  %v91 = vpop.f32.mrb[0].mxu0
  %v92 = vadd.f32 %v39, %v91
  %v93 = vpop.f32.mrb[0].mxu0
  %v94 = vpop.f32.mrb[0].mxu0
  %v95 = vadd.f32 %v39, %v94
  %v96 = vpop.f32.mrb[0].mxu0
  %97 = vdwg.mxu0
  %v98 = vmax.f32 %v92, 0.0
  %v99 = vmax.f32 %v95, 0.0
  %v100 = vpack.c.bf16 %v99, %v98
  %v101 = vld [vmem:[%s3] sm:$0xf]
  %v102 = vld [vmem:[%s3 + $0x4] sm:$0xf]
  %v103 = vld [vmem:[%s3 + $0x8] sm:$0xf]
  %v104 = vld [vmem:[%s3 + $0xc] sm:$0xf]
  %v105 = vld [vmem:[%s3 + $0x10] sm:$0xf]
  %v106 = vld [vmem:[%s3 + $0x14] sm:$0xf]
  %v107 = vld [vmem:[%s3 + $0x18] sm:$0xf]
  %v108 = vld [vmem:[%s3 + $0x1c] sm:$0xf]
  %v109 = vld [vmem:[%s4] sm:$0x1]
  %v111 = vlaneseq
  %v112 = vshrl.u32 %v111, 7
  %v113 = vsub.s32 0, %v112
  %v114 = vrot.slane %v109, %v113
  %v124 = vunpack.c.l.b16 %v101
  %v125 = vunpack.c.l.b16 %v102
  %v126 = vunpack.c.l.b16 %v103
  %v127 = vunpack.c.l.b16 %v104
  %v128 = vunpack.c.l.b16 %v105
  %v129 = vunpack.c.l.b16 %v106
  %v130 = vunpack.c.l.b16 %v107
  %v131 = vunpack.c.l.b16 %v108
  %v132 = vpack.c.b16 %v125, %v124
  %v133 = vpack.c.b16 %v127, %v126
  %v134 = vpack.c.b16 %v129, %v128
  %v135 = vpack.c.b16 %v131, %v130
  %vm140 = vcmask 523264
  %v142 = vsel %vm140, %v100, 0
  %144 = vmatprep.subr.bf16.mxu0 0
  %145 = vmatpush1.bf16.msra.mxu0 %v132
  %146 = vmatprep.subr.bf16.mxu0 0
  %147 = vmatpush1.bf16.msra.mxu0 %v133
  %148 = vmatprep.subr.bf16.mxu0 0
  %149 = vmatpush1.bf16.msra.mxu0 %v134
  %150 = vmatprep.subr.bf16.mxu0 0
  %151 = vmatpush1.bf16.msra.mxu0 %v135
  %152 = vmatprep.subr.bf16.mxu0 0
  %153 = vmatpush1.bf16.msra.mxu0 0
  %154 = vmatprep.subr.bf16.mxu0 0
  %155 = vmatpush1.bf16.msra.mxu0 0
  %156 = vmatprep.subr.bf16.mxu0 0
  %157 = vmatpush1.bf16.msra.mxu0 0
  %158 = vmatprep.subr.bf16.mxu0 0
  %159 = vmatpush1.bf16.msra.mxu0 0
  %160 = vmatprep.subr.bf16.mxu0 0
  %161 = vmatpush1.bf16.msra.mxu0 0
  %162 = vmatprep.subr.bf16.mxu0 0
  %163 = vmatpush1.bf16.msra.mxu0 0
  %164 = vmatprep.subr.bf16.mxu0 0
  %165 = vmatpush1.bf16.msra.mxu0 0
  %166 = vmatprep.subr.bf16.mxu0 0
  %167 = vmatpush1.bf16.msra.mxu0 0
  %168 = vmatprep.subr.bf16.mxu0 0
  %169 = vmatpush1.bf16.msra.mxu0 0
  %170 = vmatprep.subr.bf16.mxu0 0
  %171 = vmatpush1.bf16.msra.mxu0 0
  %172 = vmatprep.subr.bf16.mxu0 0
  %173 = vmatpush1.bf16.msra.mxu0 0
  %174 = vmatprep.subr.bf16.mxu0 0
  %175 = vmatpush1.bf16.msra.mxu0 0
  %176 = vmatprep.mubr.bf16.mxu0 0
  %177 = vmatmul.mubr.bf16.gmra.mrb[0].mxu0 %v142
  %v178 = vpop.f32.mrb[0].mxu0
  %v179 = vadd.f32 %v114, %v178
  %v180 = vpop.f32.mrb[0].mxu0
  %v181 = vpop.f32.mrb[0].mxu0
  %v182 = vadd.f32 %v114, %v181
  %v183 = vpop.f32.mrb[0].mxu0
  %184 = vdwg.mxu0
  %v185 = vadd.f32 %v27, %v179
  %v186 = vadd.f32 %v28, %v182
  %v187 = vsel %vm53, %v185, 0.0
  %188 = vadd.xlane.f32.xlu0 %v187
  %v189 = vpop.xlane.xlu0 %188
  %v190 = vsel %vm53, %v186, 0.0
  %191 = vadd.xlane.f32.xlu0 %v190
  %v192 = vpop.xlane.xlu0 %191
  %v193 = vrcp.pop 32.0
  %v194 = vmul.f32 %v189, %v193
  %v195 = vmul.f32 %v192, %v193
  %v196 = vsub.f32 %v185, %v194
  %v197 = vsub.f32 %v186, %v195
  %v198 = vmul.f32 %v196, %v196
  %v199 = vmul.f32 %v197, %v197
  %v200 = vsel %vm53, %v198, 0.0
  %201 = vadd.xlane.f32.xlu0 %v200
  %v202 = vpop.xlane.xlu0 %201
  %v203 = vsel %vm53, %v199, 0.0
  %204 = vadd.xlane.f32.xlu0 %v203
  %v205 = vpop.xlane.xlu0 %204
  %v206 = vmul.f32 %v202, %v193
  %v207 = vmul.f32 %v205, %v193
  %v208 = vadd.f32 %v206, 1e-05
  %v209 = vadd.f32 %v207, 1e-05
  %v210 = vrsqrt.pop %v208
  %v211 = vrsqrt.pop %v209
  %v212 = vmul.f32 %v196, %v210
  %v213 = vmul.f32 %v197, %v211
  %v214 = vld [vmem:[%s5] sm:$0x1]
  %v216 = vlaneseq
  %v217 = vshrl.u32 %v216, 7
  %v218 = vsub.s32 0, %v217
  %v219 = vrot.slane %v214, %v218
  %v221 = vmul.f32 %v212, %v219
  %v222 = vmul.f32 %v213, %v219
  %v223 = vld [vmem:[%s6] sm:$0x1]
  %v225 = vlaneseq
  %v226 = vshrl.u32 %v225, 7
  %v227 = vsub.s32 0, %v226
  %v228 = vrot.slane %v223, %v227
  %v230 = vadd.f32 %v221, %v228
  %v231 = vadd.f32 %v222, %v228
  %232 = vst.msk [vmem:[%s7] sm:$0xff] %vm53, %v230
  %233 = vst.msk [vmem:[%s7 + $0x8] sm:$0xff] %vm53, %v231
  // Predicated region
  $region30: #{bert_forward.10} parent=0 // pred_check
    _
  $region31: #{bert_forward.10} parent=0 // pred_check_branch
    %235 = sbr.rel (0) target = $region33
  $region32: #{bert_forward.10} parent=0 // pred_region
    _
  $region33: #{bert_forward.10} parent=0 // pred_fallthru
    _
  // Predicated region
  $region34: #{bert_forward.10} parent=0 // pred_check
    _
  $region35: #{bert_forward.10} parent=0 // pred_check_branch
    %237 = sbr.rel (0) target = $region37
  $region36: #{bert_forward.10} parent=0 // pred_region
    _
  $region37: #{bert_forward.10} parent=0 // pred_fallthru
    _

// kernel: bert_forward.9
$region0: #{bert_forward.9}
  #allocation0 [shape = 'u32[]', space=smem, size = 0x4, offset = 0x4, fixed_abs, tag = 'smem constant byte address 0x4 - core index']
  #allocation1 [shape = 'u32[144,128]{1,0:T(1,128)}', space=vmem, size = 0x12000, scoped, tag = 'internal scratch']
  #allocation2 [shape = 's32[1]{0}', space=sflag, size = 0x4, scoped, tag = 'scoped memory for bert_forward.9']
  #allocation3 [shape = 'u8[512]{0}', space=smem, size = 0x200, scoped, tag = 'prefetched SMEM operand 0']
  %s0 = inlined_call_operand.vmem [shape: s32[2], index: 0, kind: input, shape index: {}]
  %s1 = inlined_call_operand.vmem [shape: f32[2,8,32], index: 1, kind: input, shape index: {}]
  %s2 = inlined_call_operand.vmem [shape: bf16[32,96], index: 2, kind: input, shape index: {}]
  %s3 = inlined_call_operand.vmem [shape: f32[1,96], index: 3, kind: input, shape index: {}]
  %s4 = inlined_call_operand.vmem [shape: bf16[32,32], index: 4, kind: input, shape index: {}]
  %s5 = inlined_call_operand.vmem [shape: f32[1,32], index: 5, kind: input, shape index: {}]
  %s6 = inlined_call_operand.vmem [shape: f32[1,32], index: 6, kind: input, shape index: {}]
  %s7 = inlined_call_operand.vmem [shape: f32[1,32], index: 7, kind: input, shape index: {}]
  %s8 = inlined_call_operand.vmem [shape: f32[2,8,32], index: 8, kind: output, shape index: {}]
  %s9 = sld [smem:[#allocation0]]
  $region61: #{bert_forward.9} parent=0
    _
  %s11 = ssub.s32 1, %s9
  %s12 = scalar_select 0, %s11, %s9
  %s13 = sshll.u32 %s0, 4
  %s14 = int_to_ptr.vmem [resolvable:$true] %s13
  %16 = dma.vmem_to_smem %s14, 16, [#allocation3], [#allocation2]
  %17 = dma.done [#allocation2], 16
  %18 = sfence
  loop: start=0, step=1, limit=4
  $region2: #{bert_forward.9} parent=0 // loop_pre_header
    _
  $region3: #{bert_forward.9} parent=0 // loop_header
    %s20 = sphi 0, %s24
    %p21 = scmp.ge.s32.totalorder %s20, 4
    %s30 = sphi 0, %s32
    %s33 = sphi 0, %s30
    %s34 = sphi 0, %s33
    %s50 = sphi 0, %s34
    %s54 = sphi 0, %s54
    %s56 = sphi 0, %s54
    %s57 = sphi 0, %s56
    %s71 = sphi 0, %s57
    %s75 = sphi 0, %s75
    %s77 = sphi 0, %s75
    %s78 = sphi 0, %s77
    %s92 = sphi 0, %s78
    %s96 = sphi 0, %s96
    %s98 = sphi 0, %s96
    %s99 = sphi 0, %s98
    %s113 = sphi 0, %s99
    %s117 = sphi 0, %s117
    %s119 = sphi 0, %s117
    %s120 = sphi 0, %s119
    %s134 = sphi 0, %s120
    %s138 = sphi 0, %s138
    %s140 = sphi 0, %s138
    %s141 = sphi 0, %s140
    %s155 = sphi 0, %s141
    %s159 = sphi 0, %s159
    %s161 = sphi 0, %s159
    %s162 = sphi 0, %s161
    %s176 = sphi 0, %s162
    %s182 = sphi 0, %s184
    %s185 = sphi 0, %s182
    %s186 = sphi 0, %s185
    %s202 = sphi 0, %s186
  $region4: #{bert_forward.9} parent=0 // loop_header_branch
    %23 = sbr.rel (%p21) target = $region8
  $region5: #{bert_forward.9} parent=0 // loop_body
    %s25 = ssub.s32 %s20, 1
    %s26 = ssub.s32 %s20, 2
    %s27 = sadd.s32 %s20, 1
    %s28 = ssub.s32 %s20, %s27
    %p29 = scmp.eq.s32.totalorder %s28, 0
    %s31 = sadd.s32 %s30, 1
    %s32 = scalar_select %p29, %s30, %s31
    %p35 = pneg %p29
    %p36 = scmp.eq.s32.totalorder %s20, 1
    %p37 = por %p35, %p36
    %p38 = scmp.ne.s32.totalorder %s30, %s33
    %p39 = scmp.eq.s32.totalorder %s20, 0
    %p40 = por %p38, %p39
    %p41 = scmp.ne.s32.totalorder %s30, %s33
    %p42 = scmp.eq.s32.totalorder %s25, 1
    %p43 = por %p41, %p42
    %p44 = scmp.ne.s32.totalorder %s33, %s34
    %p45 = scmp.eq.s32.totalorder %s25, 0
    %p46 = por %p44, %p45
    %p47 = scmp.ne.s32.totalorder %s33, %s34
    %p48 = scmp.eq.s32.totalorder %s26, 1
    %p49 = por %p47, %p48
    %p51 = scmp.ne.s32.totalorder %s34, %s50
    %p52 = scmp.eq.s32.totalorder %s26, 0
    %p53 = por %p51, %p52
    %s55 = sadd.s32 %s54, 1
    %p58 = scmp.eq.s32.totalorder %s20, 1
    %p59 = scmp.ne.s32.totalorder %s54, %s56
    %p60 = scmp.eq.s32.totalorder %s20, 0
    %p61 = por %p59, %p60
    %p62 = scmp.ne.s32.totalorder %s54, %s56
    %p63 = scmp.eq.s32.totalorder %s25, 1
    %p64 = por %p62, %p63
    %p65 = scmp.ne.s32.totalorder %s56, %s57
    %p66 = scmp.eq.s32.totalorder %s25, 0
    %p67 = por %p65, %p66
    %p68 = scmp.ne.s32.totalorder %s56, %s57
    %p69 = scmp.eq.s32.totalorder %s26, 1
    %p70 = por %p68, %p69
    %p72 = scmp.ne.s32.totalorder %s57, %s71
    %p73 = scmp.eq.s32.totalorder %s26, 0
    %p74 = por %p72, %p73
    %s76 = sadd.s32 %s75, 1
    %p79 = scmp.eq.s32.totalorder %s20, 1
    %p80 = scmp.ne.s32.totalorder %s75, %s77
    %p81 = scmp.eq.s32.totalorder %s20, 0
    %p82 = por %p80, %p81
    %p83 = scmp.ne.s32.totalorder %s75, %s77
    %p84 = scmp.eq.s32.totalorder %s25, 1
    %p85 = por %p83, %p84
    %p86 = scmp.ne.s32.totalorder %s77, %s78
    %p87 = scmp.eq.s32.totalorder %s25, 0
    %p88 = por %p86, %p87
    %p89 = scmp.ne.s32.totalorder %s77, %s78
    %p90 = scmp.eq.s32.totalorder %s26, 1
    %p91 = por %p89, %p90
    %p93 = scmp.ne.s32.totalorder %s78, %s92
    %p94 = scmp.eq.s32.totalorder %s26, 0
    %p95 = por %p93, %p94
    %s97 = sadd.s32 %s96, 1
    %p100 = scmp.eq.s32.totalorder %s20, 1
    %p101 = scmp.ne.s32.totalorder %s96, %s98
    %p102 = scmp.eq.s32.totalorder %s20, 0
    %p103 = por %p101, %p102
    %p104 = scmp.ne.s32.totalorder %s96, %s98
    %p105 = scmp.eq.s32.totalorder %s25, 1
    %p106 = por %p104, %p105
    %p107 = scmp.ne.s32.totalorder %s98, %s99
    %p108 = scmp.eq.s32.totalorder %s25, 0
    %p109 = por %p107, %p108
    %p110 = scmp.ne.s32.totalorder %s98, %s99
    %p111 = scmp.eq.s32.totalorder %s26, 1
    %p112 = por %p110, %p111
    %p114 = scmp.ne.s32.totalorder %s99, %s113
    %p115 = scmp.eq.s32.totalorder %s26, 0
    %p116 = por %p114, %p115
    %s118 = sadd.s32 %s117, 1
    %p121 = scmp.eq.s32.totalorder %s20, 1
    %p122 = scmp.ne.s32.totalorder %s117, %s119
    %p123 = scmp.eq.s32.totalorder %s20, 0
    %p124 = por %p122, %p123
    %p125 = scmp.ne.s32.totalorder %s117, %s119
    %p126 = scmp.eq.s32.totalorder %s25, 1
    %p127 = por %p125, %p126
    %p128 = scmp.ne.s32.totalorder %s119, %s120
    %p129 = scmp.eq.s32.totalorder %s25, 0
    %p130 = por %p128, %p129
    %p131 = scmp.ne.s32.totalorder %s119, %s120
    %p132 = scmp.eq.s32.totalorder %s26, 1
    %p133 = por %p131, %p132
    %p135 = scmp.ne.s32.totalorder %s120, %s134
    %p136 = scmp.eq.s32.totalorder %s26, 0
    %p137 = por %p135, %p136
    %s139 = sadd.s32 %s138, 1
    %p142 = scmp.eq.s32.totalorder %s20, 1
    %p143 = scmp.ne.s32.totalorder %s138, %s140
    %p144 = scmp.eq.s32.totalorder %s20, 0
    %p145 = por %p143, %p144
    %p146 = scmp.ne.s32.totalorder %s138, %s140
    %p147 = scmp.eq.s32.totalorder %s25, 1
    %p148 = por %p146, %p147
    %p149 = scmp.ne.s32.totalorder %s140, %s141
    %p150 = scmp.eq.s32.totalorder %s25, 0
    %p151 = por %p149, %p150
    %p152 = scmp.ne.s32.totalorder %s140, %s141
    %p153 = scmp.eq.s32.totalorder %s26, 1
    %p154 = por %p152, %p153
    %p156 = scmp.ne.s32.totalorder %s141, %s155
    %p157 = scmp.eq.s32.totalorder %s26, 0
    %p158 = por %p156, %p157
    %s160 = sadd.s32 %s159, 1
    %p163 = scmp.eq.s32.totalorder %s20, 1
    %p164 = scmp.ne.s32.totalorder %s159, %s161
    %p165 = scmp.eq.s32.totalorder %s20, 0
    %p166 = por %p164, %p165
    %p167 = scmp.ne.s32.totalorder %s159, %s161
    %p168 = scmp.eq.s32.totalorder %s25, 1
    %p169 = por %p167, %p168
    %p170 = scmp.ne.s32.totalorder %s161, %s162
    %p171 = scmp.eq.s32.totalorder %s25, 0
    %p172 = por %p170, %p171
    %p173 = scmp.ne.s32.totalorder %s161, %s162
    %p174 = scmp.eq.s32.totalorder %s26, 1
    %p175 = por %p173, %p174
    %p177 = scmp.ne.s32.totalorder %s162, %s176
    %p178 = scmp.eq.s32.totalorder %s26, 0
    %p179 = por %p177, %p178
    %s180 = ssub.s32 %s20, %s27
    %p181 = scmp.eq.s32.totalorder %s180, 0
    %s183 = sadd.s32 %s182, 1
    %s184 = scalar_select %p181, %s182, %s183
    %p187 = pneg %p181
    %p188 = scmp.eq.s32.totalorder %s20, 1
    %p189 = por %p187, %p188
    %p190 = scmp.ne.s32.totalorder %s182, %s185
    %p191 = scmp.eq.s32.totalorder %s20, 0
    %p192 = por %p190, %p191
    %p193 = scmp.ne.s32.totalorder %s182, %s185
    %p194 = scmp.eq.s32.totalorder %s25, 1
    %p195 = por %p193, %p194
    %p196 = scmp.ne.s32.totalorder %s185, %s186
    %p197 = scmp.eq.s32.totalorder %s25, 0
    %p198 = por %p196, %p197
    %p199 = scmp.ne.s32.totalorder %s185, %s186
    %p200 = scmp.eq.s32.totalorder %s26, 1
    %p201 = por %p199, %p200
    %p203 = scmp.ne.s32.totalorder %s186, %s202
    %p204 = scmp.eq.s32.totalorder %s26, 0
    %p205 = por %p203, %p204
    %p206 = scmp.le.s32.totalorder 1, %s20
    %p207 = scmp.lt.s32.totalorder %s20, 3
    %p208 = pnand %p206, %p207
    %p209 = pneg %p208
    // Predicated region
    $region9: #{bert_forward.9} parent=5 // pred_check
      _
    $region10: #{bert_forward.9} parent=5 // pred_check_branch
      %211 = sbr.rel (%p208) target = $region12
    $region11: #{bert_forward.9} parent=5 // pred_region
      %s212 = ssub.s32 %s20, 1
      // Predicated region
      $region13: #{bert_forward.9} parent=11 // pred_check
        %p213 = pneg %p67
      $region14: #{bert_forward.9} parent=11 // pred_check_branch
        %215 = sbr.rel (%p213) target = $region16
      $region15: #{bert_forward.9} parent=11 // pred_region
        _
      $region16: #{bert_forward.9} parent=11 // pred_fallthru
        _
      // Predicated region
      $region17: #{bert_forward.9} parent=11 // pred_check
        %p216 = pneg %p88
      $region18: #{bert_forward.9} parent=11 // pred_check_branch
        %218 = sbr.rel (%p216) target = $region20
      $region19: #{bert_forward.9} parent=11 // pred_region
        _
      $region20: #{bert_forward.9} parent=11 // pred_fallthru
        _
      // Predicated region
      $region21: #{bert_forward.9} parent=11 // pred_check
        %p219 = pneg %p109
      $region22: #{bert_forward.9} parent=11 // pred_check_branch
        %221 = sbr.rel (%p219) target = $region24
      $region23: #{bert_forward.9} parent=11 // pred_region
        _
      $region24: #{bert_forward.9} parent=11 // pred_fallthru
        _
      // Predicated region
      $region25: #{bert_forward.9} parent=11 // pred_check
        %p222 = pneg %p130
      $region26: #{bert_forward.9} parent=11 // pred_check_branch
        %224 = sbr.rel (%p222) target = $region28
      $region27: #{bert_forward.9} parent=11 // pred_region
        _
      $region28: #{bert_forward.9} parent=11 // pred_fallthru
        _
      // Predicated region
      $region29: #{bert_forward.9} parent=11 // pred_check
        %p225 = pneg %p151
      $region30: #{bert_forward.9} parent=11 // pred_check_branch
        %227 = sbr.rel (%p225) target = $region32
      $region31: #{bert_forward.9} parent=11 // pred_region
        _
      $region32: #{bert_forward.9} parent=11 // pred_fallthru
        _
      // Predicated region
      $region33: #{bert_forward.9} parent=11 // pred_check
        %p228 = pneg %p172
      $region34: #{bert_forward.9} parent=11 // pred_check_branch
        %230 = sbr.rel (%p228) target = $region36
      $region35: #{bert_forward.9} parent=11 // pred_region
        _
      $region36: #{bert_forward.9} parent=11 // pred_fallthru
        _
    $region12: #{bert_forward.9} parent=5 // pred_fallthru
      _
    %p231 = scmp.lt.s32.totalorder %s20, 2
    // Predicated region
    $region37: #{bert_forward.9} parent=5 // pred_check
      %p232 = pneg %p231
    $region38: #{bert_forward.9} parent=5 // pred_check_branch
      %234 = sbr.rel (%p232) target = $region40
    $region39: #{bert_forward.9} parent=5 // pred_region
      // Predicated region
      $region41: #{bert_forward.9} parent=39 // pred_check
        %p235 = pneg %p40
      $region42: #{bert_forward.9} parent=39 // pred_check_branch
        %237 = sbr.rel (%p235) target = $region44
      $region43: #{bert_forward.9} parent=39 // pred_region
        %p238 = scmp.lt.s32.totalorder %s20, 1
        %s239 = scalar_select %p238, %s20, 1
        %s240 = smul.addr %s239, 8
        %s241 = scalar_lea.vmem %s1, %s240
      $region44: #{bert_forward.9} parent=39 // pred_fallthru
        _
    $region40: #{bert_forward.9} parent=5 // pred_fallthru
      _
    %p242 = scmp.le.s32.totalorder 1, %s20
    %p243 = scmp.lt.s32.totalorder %s20, 3
    %p244 = pnand %p242, %p243
    %p245 = pneg %p244
    // Predicated region
    $region45: #{bert_forward.9} parent=5 // pred_check
      _
    $region46: #{bert_forward.9} parent=5 // pred_check_branch
      %247 = sbr.rel (%p244) target = $region48
    $region47: #{bert_forward.9} parent=5 // pred_region
      %s248 = ssub.s32 %s20, 1
      %p249 = scmp.lt.s32.totalorder %s25, 1
      %s250 = scalar_select %p249, %s25, 1
      %s251 = smul.addr %s250, 8
      %s252 = scalar_lea.vmem %s1, %s251
      %p253 = pneg %p46
      %p254 = pneg %p43
      %p255 = pneg %p67
      %p256 = pneg %p64
      %p257 = pneg %p88
      %p258 = pneg %p85
      %p259 = pneg %p109
      %p260 = pneg %p106
      %p261 = pneg %p130
      %p262 = pneg %p127
      %p263 = pneg %p151
      %p264 = pneg %p148
      %p265 = pneg %p172
      %p266 = pneg %p169
      %p267 = pneg %p198
      %p268 = pneg %p195
      %p269 = scmp.lt.s32.totalorder %s25, 1
      %s270 = scalar_select %p269, %s25, 1
      %s271 = smul.addr %s270, 8
      %s272 = scalar_lea.vmem %s8, %s271
      %p273 = scmp.lt.s32.totalorder %s25, 1
      %s274 = scalar_select %p273, %s25, 1
      %s275 = smul.addr %s274, 8
      %s276 = scalar_lea.vmem %s1, %s275
      %p277 = scmp.lt.s32.totalorder %s25, 1
      %s278 = scalar_select %p277, %s25, 1
      %s279 = smul.addr %s278, 8
      %s280 = scalar_lea.vmem %s8, %s279
      %v282 = vld [vmem:[%s276] sm:$0xff]
      %v283 = vpack.c.bf16 %v282, %v282
      %v284 = vld [vmem:[%s2] sm:$0xf]
      %v285 = vld [vmem:[%s2 + $0x4] sm:$0xf]
      %v286 = vld [vmem:[%s2 + $0x8] sm:$0xf]
      %v287 = vld [vmem:[%s2 + $0xc] sm:$0xf]
      %v288 = vld [vmem:[%s3] sm:$0x1]
      %v290 = vlaneseq
      %v291 = vshrl.u32 %v290, 7
      %v292 = vsub.s32 0, %v291
      %v293 = vrot.slane %v288, %v292
      %v299 = vunpack.c.l.b16 %v284
      %v300 = vunpack.c.l.b16 %v285
      %v301 = vunpack.c.l.b16 %v286
      %v302 = vunpack.c.l.b16 %v287
      %v303 = vpack.c.b16 %v300, %v299
      %v304 = vpack.c.b16 %v302, %v301
      %vm307 = vcmask 261120
      %v309 = vsel %vm307, %v283, 0
      %311 = vmatprep.subr.bf16.mxu0 0
      %312 = vmatpush1.bf16.msra.mxu0 %v303
      %313 = vmatprep.subr.bf16.mxu0 0
      %314 = vmatpush1.bf16.msra.mxu0 %v304
      %315 = vmatprep.subr.bf16.mxu0 0
      %316 = vmatpush1.bf16.msra.mxu0 0
      %317 = vmatprep.subr.bf16.mxu0 0
      %318 = vmatpush1.bf16.msra.mxu0 0
      %319 = vmatprep.subr.bf16.mxu0 0
      %320 = vmatpush1.bf16.msra.mxu0 0
      %321 = vmatprep.subr.bf16.mxu0 0
      %322 = vmatpush1.bf16.msra.mxu0 0
      %323 = vmatprep.subr.bf16.mxu0 0
      %324 = vmatpush1.bf16.msra.mxu0 0
      %325 = vmatprep.subr.bf16.mxu0 0
      %326 = vmatpush1.bf16.msra.mxu0 0
      %327 = vmatprep.subr.bf16.mxu0 0
      %328 = vmatpush1.bf16.msra.mxu0 0
      %329 = vmatprep.subr.bf16.mxu0 0
      %330 = vmatpush1.bf16.msra.mxu0 0
      %331 = vmatprep.subr.bf16.mxu0 0
      %332 = vmatpush1.bf16.msra.mxu0 0
      %333 = vmatprep.subr.bf16.mxu0 0
      %334 = vmatpush1.bf16.msra.mxu0 0
      %335 = vmatprep.subr.bf16.mxu0 0
      %336 = vmatpush1.bf16.msra.mxu0 0
      %337 = vmatprep.subr.bf16.mxu0 0
      %338 = vmatpush1.bf16.msra.mxu0 0
      %339 = vmatprep.subr.bf16.mxu0 0
      %340 = vmatpush1.bf16.msra.mxu0 0
      %341 = vmatprep.subr.bf16.mxu0 0
      %342 = vmatpush1.bf16.msra.mxu0 0
      %343 = vmatprep.mubr.bf16.mxu0 0
      %344 = vmatmul.mubr.bf16.gmra.mrb[0].mxu0 %v309
      %v345 = vpop.f32.mrb[0].mxu0
      %v346 = vadd.f32 %v293, %v345
      %v347 = vpop.f32.mrb[0].mxu0
      %v348 = vpop.f32.mrb[0].mxu0
      %v349 = vpop.f32.mrb[0].mxu0
      %350 = vdwg.mxu0
      %s351 = sld [smem:[#allocation3 + %s25]]
      %v352 = vlaneseq
      %v353 = vand.u32 %v352, 127
      %v354 = vstv %s351
      %vm355 = vcmp.lt.s32.totalorder %v353, %v354
      %v356 = vpack.c.bf16 %v346, %v346
      %358 = vrot.lane.b32.xlu0 %v356, 96
      %v359 = vpop.permute.xlu0 %358
      %vm360 = vcmask 130048
      %v362 = vsel %vm360, %v356, 0
      %v365 = vsel %vm360, %v359, 0
      %367 = vmatprep.subr.bf16.mxu0 0
      %368 = vmatpush1.bf16.xpose.msra.mxu0 %v365
      %369 = vmatprep.subr.bf16.mxu0 0
      %370 = vmatpush1.bf16.xpose.msra.mxu0 0
      %371 = vmatprep.subr.bf16.mxu0 0
      %372 = vmatpush1.bf16.xpose.msra.mxu0 0
      %373 = vmatprep.subr.bf16.mxu0 0
      %374 = vmatpush1.bf16.xpose.msra.mxu0 0
      %375 = vmatprep.subr.bf16.mxu0 0
      %376 = vmatpush1.bf16.xpose.msra.mxu0 0
      %377 = vmatprep.subr.bf16.mxu0 0
      %378 = vmatpush1.bf16.xpose.msra.mxu0 0
      %379 = vmatprep.subr.bf16.mxu0 0
      %380 = vmatpush1.bf16.xpose.msra.mxu0 0
      %381 = vmatprep.subr.bf16.mxu0 0
      %382 = vmatpush1.bf16.xpose.msra.mxu0 0
      %383 = vmatprep.subr.bf16.mxu0 0
      %384 = vmatpush1.bf16.xpose.msra.mxu0 0
      %385 = vmatprep.subr.bf16.mxu0 0
      %386 = vmatpush1.bf16.xpose.msra.mxu0 0
      %387 = vmatprep.subr.bf16.mxu0 0
      %388 = vmatpush1.bf16.xpose.msra.mxu0 0
      %389 = vmatprep.subr.bf16.mxu0 0
      %390 = vmatpush1.bf16.xpose.msra.mxu0 0
      %391 = vmatprep.subr.bf16.mxu0 0
      %392 = vmatpush1.bf16.xpose.msra.mxu0 0
      %393 = vmatprep.subr.bf16.mxu0 0
      %394 = vmatpush1.bf16.xpose.msra.mxu0 0
      %395 = vmatprep.subr.bf16.mxu0 0
      %396 = vmatpush1.bf16.xpose.msra.mxu0 0
      %397 = vmatprep.subr.bf16.mxu0 0
      %398 = vmatpush1.bf16.xpose.msra.mxu0 0
      %399 = vmatprep.mubr.bf16.mxu0 0
      %400 = vmatmul.mubr.bf16.gmra.mrb[0].mxu0 %v362
      %v401 = vpop.f32.mrb[0].mxu0
      %v402 = vadd.f32 0.0, %v401
      %v403 = vpop.f32.mrb[0].mxu0
      %v404 = vpop.f32.mrb[0].mxu0
      %v405 = vpop.f32.mrb[0].mxu0
      %406 = vdwg.mxu0
      %v407 = vmul.f32 %v402, 0.25
      %v408 = vsel %vm355, %v407, -1e+09
      %vm409 = vcmask 64512
      %v410 = vsel %vm409, %v408, -inf
      %411 = vmax.xlane.f32.xlu0 %v410
      %v412 = vpop.xlane.xlu0 %411
      %v413 = vsub.f32 %v408, %v412
      %v414 = vmul.f32 %v413, 1.442695
      %v415 = vpow.pop %v414
      %v416 = vsel %vm409, %v415, 0.0
      %417 = vadd.xlane.f32.xlu0 %v416
      %v418 = vpop.xlane.xlu0 %417
      %v419 = vrcp.pop %v418
      %v420 = vmul.f32 %v415, %v419
      %v421 = vpack.c.bf16 %v420, %v420
      %422 = vrot.lane.b32.xlu0 %v356, 64
      %v423 = vpop.permute.xlu0 %422
      %v425 = vsel %vm409, %v421, 0
      %vm427 = vcmask 1043456
      %v429 = vsel %vm427, %v423, 0
      %431 = vmatprep.subr.bf16.mxu0 0
      %432 = vmatpush1.bf16.msra.mxu0 %v429
      %433 = vmatprep.subr.bf16.mxu0 0
      %434 = vmatpush1.bf16.msra.mxu0 0
      %435 = vmatprep.subr.bf16.mxu0 0
      %436 = vmatpush1.bf16.msra.mxu0 0
      %437 = vmatprep.subr.bf16.mxu0 0
      %438 = vmatpush1.bf16.msra.mxu0 0
      %439 = vmatprep.subr.bf16.mxu0 0
      %440 = vmatpush1.bf16.msra.mxu0 0
      %441 = vmatprep.subr.bf16.mxu0 0
      %442 = vmatpush1.bf16.msra.mxu0 0
      %443 = vmatprep.subr.bf16.mxu0 0
      %444 = vmatpush1.bf16.msra.mxu0 0
      %445 = vmatprep.subr.bf16.mxu0 0
      %446 = vmatpush1.bf16.msra.mxu0 0
      %447 = vmatprep.subr.bf16.mxu0 0
      %448 = vmatpush1.bf16.msra.mxu0 0
      %449 = vmatprep.subr.bf16.mxu0 0
      %450 = vmatpush1.bf16.msra.mxu0 0
      %451 = vmatprep.subr.bf16.mxu0 0
      %452 = vmatpush1.bf16.msra.mxu0 0
      %453 = vmatprep.subr.bf16.mxu0 0
      %454 = vmatpush1.bf16.msra.mxu0 0
      %455 = vmatprep.subr.bf16.mxu0 0
      %456 = vmatpush1.bf16.msra.mxu0 0
      %457 = vmatprep.subr.bf16.mxu0 0
      %458 = vmatpush1.bf16.msra.mxu0 0
      %459 = vmatprep.subr.bf16.mxu0 0
      %460 = vmatpush1.bf16.msra.mxu0 0
      %461 = vmatprep.subr.bf16.mxu0 0
      %462 = vmatpush1.bf16.msra.mxu0 0
      %463 = vmatprep.mubr.bf16.mxu0 0
      %464 = vmatmul.mubr.bf16.gmra.mrb[0].mxu0 %v425
      %v465 = vpop.f32.mrb[0].mxu0
      %v466 = vadd.f32 0.0, %v465
      %v467 = vpop.f32.mrb[0].mxu0
      %v468 = vpop.f32.mrb[0].mxu0
      %v469 = vpop.f32.mrb[0].mxu0
      %470 = vdwg.mxu0
      %v471 = vpack.c.bf16 %v466, %v466
      %v472 = vld [vmem:[%s4] sm:$0xf]
      %v473 = vld [vmem:[%s4 + $0x4] sm:$0xf]
      %474 = vrot.lane.b32.xlu0 %v356, 112
      %v475 = vpop.permute.xlu0 %474
      %476 = vrot.lane.b32.xlu0 %v356, 80
      %v477 = vpop.permute.xlu0 %476
      %v479 = vsel %vm360, %v475, 0
      %v482 = vsel %vm360, %v477, 0
      %484 = vmatprep.subr.bf16.mxu0 0
      %485 = vmatpush1.bf16.xpose.msra.mxu0 %v482
      %486 = vmatprep.subr.bf16.mxu0 0
      %487 = vmatpush1.bf16.xpose.msra.mxu0 0
      %488 = vmatprep.subr.bf16.mxu0 0
      %489 = vmatpush1.bf16.xpose.msra.mxu0 0
      %490 = vmatprep.subr.bf16.mxu0 0
      %491 = vmatpush1.bf16.xpose.msra.mxu0 0
      %492 = vmatprep.subr.bf16.mxu0 0
      %493 = vmatpush1.bf16.xpose.msra.mxu0 0
      %494 = vmatprep.subr.bf16.mxu0 0
      %495 = vmatpush1.bf16.xpose.msra.mxu0 0
      %496 = vmatprep.subr.bf16.mxu0 0
      %497 = vmatpush1.bf16.xpose.msra.mxu0 0
      %498 = vmatprep.subr.bf16.mxu0 0
      %499 = vmatpush1.bf16.xpose.msra.mxu0 0
      %500 = vmatprep.subr.bf16.mxu0 0
      %501 = vmatpush1.bf16.xpose.msra.mxu0 0
      %502 = vmatprep.subr.bf16.mxu0 0
      %503 = vmatpush1.bf16.xpose.msra.mxu0 0
      %504 = vmatprep.subr.bf16.mxu0 0
      %505 = vmatpush1.bf16.xpose.msra.mxu0 0
      %506 = vmatprep.subr.bf16.mxu0 0
      %507 = vmatpush1.bf16.xpose.msra.mxu0 0
      %508 = vmatprep.subr.bf16.mxu0 0
      %509 = vmatpush1.bf16.xpose.msra.mxu0 0
      %510 = vmatprep.subr.bf16.mxu0 0
      %511 = vmatpush1.bf16.xpose.msra.mxu0 0
      %512 = vmatprep.subr.bf16.mxu0 0
      %513 = vmatpush1.bf16.xpose.msra.mxu0 0
      %514 = vmatprep.subr.bf16.mxu0 0
      %515 = vmatpush1.bf16.xpose.msra.mxu0 0
      %516 = vmatprep.mubr.bf16.mxu0 0
      %517 = vmatmul.mubr.bf16.gmra.mrb[0].mxu0 %v479
      %v518 = vpop.f32.mrb[0].mxu0
      %v519 = vadd.f32 0.0, %v518
      %v520 = vpop.f32.mrb[0].mxu0
      %v521 = vpop.f32.mrb[0].mxu0
      %v522 = vpop.f32.mrb[0].mxu0
      %523 = vdwg.mxu0
      %v524 = vmul.f32 %v519, 0.25
      %v525 = vsel %vm355, %v524, -1e+09
      %v526 = vsel %vm409, %v525, -inf
      %527 = vmax.xlane.f32.xlu0 %v526
      %v528 = vpop.xlane.xlu0 %527
      %v529 = vsub.f32 %v525, %v528
      %v530 = vmul.f32 %v529, 1.442695
      %v531 = vpow.pop %v530
      %v532 = vsel %vm409, %v531, 0.0
      %533 = vadd.xlane.f32.xlu0 %v532
      %v534 = vpop.xlane.xlu0 %533
      %v535 = vrcp.pop %v534
      %v536 = vmul.f32 %v531, %v535
      %v537 = vpack.c.bf16 %v536, %v536
      %538 = vrot.lane.b32.xlu0 %v356, 48
      %v539 = vpop.permute.xlu0 %538
      %v541 = vsel %vm409, %v537, 0
      %v544 = vsel %vm427, %v539, 0
      %546 = vmatprep.subr.bf16.mxu0 0
      %547 = vmatpush1.bf16.msra.mxu0 %v544
      %548 = vmatprep.subr.bf16.mxu0 0
      %549 = vmatpush1.bf16.msra.mxu0 0
      %550 = vmatprep.subr.bf16.mxu0 0
      %551 = vmatpush1.bf16.msra.mxu0 0
      %552 = vmatprep.subr.bf16.mxu0 0
      %553 = vmatpush1.bf16.msra.mxu0 0
      %554 = vmatprep.subr.bf16.mxu0 0
      %555 = vmatpush1.bf16.msra.mxu0 0
      %556 = vmatprep.subr.bf16.mxu0 0
      %557 = vmatpush1.bf16.msra.mxu0 0
      %558 = vmatprep.subr.bf16.mxu0 0
      %559 = vmatpush1.bf16.msra.mxu0 0
      %560 = vmatprep.subr.bf16.mxu0 0
      %561 = vmatpush1.bf16.msra.mxu0 0
      %562 = vmatprep.subr.bf16.mxu0 0
      %563 = vmatpush1.bf16.msra.mxu0 0
      %564 = vmatprep.subr.bf16.mxu0 0
      %565 = vmatpush1.bf16.msra.mxu0 0
      %566 = vmatprep.subr.bf16.mxu0 0
      %567 = vmatpush1.bf16.msra.mxu0 0
      %568 = vmatprep.subr.bf16.mxu0 0
      %569 = vmatpush1.bf16.msra.mxu0 0
      %570 = vmatprep.subr.bf16.mxu0 0
      %571 = vmatpush1.bf16.msra.mxu0 0
      %572 = vmatprep.subr.bf16.mxu0 0
      %573 = vmatpush1.bf16.msra.mxu0 0
      %574 = vmatprep.subr.bf16.mxu0 0
      %575 = vmatpush1.bf16.msra.mxu0 0
      %576 = vmatprep.subr.bf16.mxu0 0
      %577 = vmatpush1.bf16.msra.mxu0 0
      %578 = vmatprep.mubr.bf16.mxu0 0
      %579 = vmatmul.mubr.bf16.gmra.mrb[0].mxu0 %v541
      %v580 = vpop.f32.mrb[0].mxu0
      %v581 = vadd.f32 0.0, %v580
      %v582 = vpop.f32.mrb[0].mxu0
      %v583 = vpop.f32.mrb[0].mxu0
      %v584 = vpop.f32.mrb[0].mxu0
      %585 = vdwg.mxu0
      %v586 = vpack.c.bf16 %v581, %v581
      %v587 = vld [vmem:[%s4 + $0x8] sm:$0xf]
      %v588 = vld [vmem:[%s4 + $0xc] sm:$0xf]
      %v591 = vunpack.c.l.b16 %v587
      %v592 = vunpack.c.l.b16 %v588
      %v593 = vpack.c.b16 %v592, %v591
      %v596 = vsel %vm360, %v586, 0
      %598 = vmatprep.subr.bf16.mxu0 0
      %599 = vmatpush1.bf16.msra.mxu0 %v593
      %600 = vmatprep.subr.bf16.mxu0 0
      %601 = vmatpush1.bf16.msra.mxu0 0
      %602 = vmatprep.subr.bf16.mxu0 0
      %603 = vmatpush1.bf16.msra.mxu0 0
      %604 = vmatprep.subr.bf16.mxu0 0
      %605 = vmatpush1.bf16.msra.mxu0 0
      %606 = vmatprep.subr.bf16.mxu0 0
      %607 = vmatpush1.bf16.msra.mxu0 0
      %608 = vmatprep.subr.bf16.mxu0 0
      %609 = vmatpush1.bf16.msra.mxu0 0
      %610 = vmatprep.subr.bf16.mxu0 0
      %611 = vmatpush1.bf16.msra.mxu0 0
      %612 = vmatprep.subr.bf16.mxu0 0
      %613 = vmatpush1.bf16.msra.mxu0 0
      %614 = vmatprep.subr.bf16.mxu0 0
      %615 = vmatpush1.bf16.msra.mxu0 0
      %616 = vmatprep.subr.bf16.mxu0 0
      %617 = vmatpush1.bf16.msra.mxu0 0
      %618 = vmatprep.subr.bf16.mxu0 0
      %619 = vmatpush1.bf16.msra.mxu0 0
      %620 = vmatprep.subr.bf16.mxu0 0
      %621 = vmatpush1.bf16.msra.mxu0 0
      %622 = vmatprep.subr.bf16.mxu0 0
      %623 = vmatpush1.bf16.msra.mxu0 0
      %624 = vmatprep.subr.bf16.mxu0 0
      %625 = vmatpush1.bf16.msra.mxu0 0
      %626 = vmatprep.subr.bf16.mxu0 0
      %627 = vmatpush1.bf16.msra.mxu0 0
      %628 = vmatprep.subr.bf16.mxu0 0
      %629 = vmatpush1.bf16.msra.mxu0 0
      %630 = vmatprep.mubr.bf16.mxu0 0
      %631 = vmatmul.mubr.bf16.gmra.mrb[0].mxu0 %v596
      %v632 = vpop.f32.mrb[0].mxu0
      %v633 = vadd.f32 0.0, %v632
      %v634 = vpop.f32.mrb[0].mxu0
      %v635 = vpop.f32.mrb[0].mxu0
      %v636 = vpop.f32.mrb[0].mxu0
      %637 = vdwg.mxu0
      %v640 = vunpack.c.l.b16 %v472
      %v641 = vunpack.c.l.b16 %v473
      %v642 = vpack.c.b16 %v641, %v640
      %v645 = vsel %vm360, %v471, 0
      %647 = vmatprep.subr.bf16.mxu0 0
      %648 = vmatpush1.bf16.msra.mxu0 %v642
      %649 = vmatprep.subr.bf16.mxu0 0
      %650 = vmatpush1.bf16.msra.mxu0 0
      %651 = vmatprep.subr.bf16.mxu0 0
      %652 = vmatpush1.bf16.msra.mxu0 0
      %653 = vmatprep.subr.bf16.mxu0 0
      %654 = vmatpush1.bf16.msra.mxu0 0
      %655 = vmatprep.subr.bf16.mxu0 0
      %656 = vmatpush1.bf16.msra.mxu0 0
      %657 = vmatprep.subr.bf16.mxu0 0
      %658 = vmatpush1.bf16.msra.mxu0 0
      %659 = vmatprep.subr.bf16.mxu0 0
      %660 = vmatpush1.bf16.msra.mxu0 0
      %661 = vmatprep.subr.bf16.mxu0 0
      %662 = vmatpush1.bf16.msra.mxu0 0
      %663 = vmatprep.subr.bf16.mxu0 0
      %664 = vmatpush1.bf16.msra.mxu0 0
      %665 = vmatprep.subr.bf16.mxu0 0
      %666 = vmatpush1.bf16.msra.mxu0 0
      %667 = vmatprep.subr.bf16.mxu0 0
      %668 = vmatpush1.bf16.msra.mxu0 0
      %669 = vmatprep.subr.bf16.mxu0 0
      %670 = vmatpush1.bf16.msra.mxu0 0
      %671 = vmatprep.subr.bf16.mxu0 0
      %672 = vmatpush1.bf16.msra.mxu0 0
      %673 = vmatprep.subr.bf16.mxu0 0
      %674 = vmatpush1.bf16.msra.mxu0 0
      %675 = vmatprep.subr.bf16.mxu0 0
      %676 = vmatpush1.bf16.msra.mxu0 0
      %677 = vmatprep.subr.bf16.mxu0 0
      %678 = vmatpush1.bf16.msra.mxu0 0
      %679 = vmatprep.mubr.bf16.mxu0 0
      %680 = vmatmul.mubr.bf16.gmra.mrb[0].mxu0 %v645
      %v681 = vpop.f32.mrb[0].mxu0
      %v682 = vadd.f32 %v633, %v681
      %v683 = vpop.f32.mrb[0].mxu0
      %v684 = vpop.f32.mrb[0].mxu0
      %v685 = vpop.f32.mrb[0].mxu0
      %686 = vdwg.mxu0
      %v687 = vld [vmem:[%s5] sm:$0x1]
      %v689 = vlaneseq
      %v690 = vshrl.u32 %v689, 7
      %v691 = vsub.s32 0, %v690
      %v692 = vrot.slane %v687, %v691
      %v694 = vadd.f32 %v682, %v692
      %v695 = vadd.f32 %v282, %v694
      %v696 = vsel %vm307, %v695, 0.0
      %697 = vadd.xlane.f32.xlu0 %v696
      %v698 = vpop.xlane.xlu0 %697
      %v699 = vrcp.pop 32.0
      %v700 = vmul.f32 %v698, %v699
      %v701 = vsub.f32 %v695, %v700
      %v702 = vmul.f32 %v701, %v701
      %v703 = vsel %vm307, %v702, 0.0
      %704 = vadd.xlane.f32.xlu0 %v703
      %v705 = vpop.xlane.xlu0 %704
      %v706 = vmul.f32 %v705, %v699
      %v707 = vadd.f32 %v706, 1e-05
      %v708 = vrsqrt.pop %v707
      %v709 = vmul.f32 %v701, %v708
      %v710 = vld [vmem:[%s6] sm:$0x1]
      %v712 = vlaneseq
      %v713 = vshrl.u32 %v712, 7
      %v714 = vsub.s32 0, %v713
      %v715 = vrot.slane %v710, %v714
      %v717 = vmul.f32 %v709, %v715
      %v718 = vld [vmem:[%s7] sm:$0x1]
      %v720 = vlaneseq
      %v721 = vshrl.u32 %v720, 7
      %v722 = vsub.s32 0, %v721
      %v723 = vrot.slane %v718, %v722
      %v725 = vadd.f32 %v717, %v723
      %726 = vst.msk [vmem:[%s280] sm:$0xff] %vm307, %v725
      %p727 = scmp.lt.s32.totalorder %s25, 1
      %s728 = scalar_select %p727, %s25, 1
      %s729 = smul.addr %s728, 8
      %s730 = scalar_lea.vmem %s8, %s729
      // Predicated region
      $region49: #{bert_forward.9} parent=47 // pred_check
        %p731 = pneg %p195
      $region50: #{bert_forward.9} parent=47 // pred_check_branch
        %733 = sbr.rel (%p731) target = $region52
      $region51: #{bert_forward.9} parent=47 // pred_region
        _
      $region52: #{bert_forward.9} parent=47 // pred_fallthru
        _
    $region48: #{bert_forward.9} parent=5 // pred_fallthru
      _
    %p734 = scmp.le.s32.totalorder 2, %s20
    // Predicated region
    $region53: #{bert_forward.9} parent=5 // pred_check
      %p735 = pneg %p734
    $region54: #{bert_forward.9} parent=5 // pred_check_branch
      %737 = sbr.rel (%p735) target = $region56
    $region55: #{bert_forward.9} parent=5 // pred_region
      %s738 = ssub.s32 %s20, 2
      // Predicated region
      $region57: #{bert_forward.9} parent=55 // pred_check
        %p739 = pneg %p201
      $region58: #{bert_forward.9} parent=55 // pred_check_branch
        %741 = sbr.rel (%p739) target = $region60
      $region59: #{bert_forward.9} parent=55 // pred_region
        %p742 = scmp.lt.s32.totalorder %s26, 1
        %s743 = scalar_select %p742, %s26, 1
        %s744 = smul.addr %s743, 8
        %s745 = scalar_lea.vmem %s8, %s744
      $region60: #{bert_forward.9} parent=55 // pred_fallthru
        _
    $region56: #{bert_forward.9} parent=5 // pred_fallthru
      _
  $region6: #{bert_forward.9} parent=0 // loop_footer
    %s24 = sadd.s32 1, %s20
  $region7: #{bert_forward.9} parent=0 // loop_footer_branch
    %19 = sbr.rel target = $region3
  $region8: #{bert_forward.9} parent=0 // loop_exit
    _

// kernel: bert_forward.15
$region0: #{bert_forward.15}
  #allocation0 [shape = 'u32[]', space=smem, size = 0x4, offset = 0x4, fixed_abs, tag = 'smem constant byte address 0x4 - core index']
  #allocation1 [shape = 'u32[144,128]{1,0:T(1,128)}', space=vmem, size = 0x12000, scoped, tag = 'internal scratch']
  #allocation2 [shape = 'f32[6,64]{1,0:T(8,128)}', space=vmem, size = 0x1000, scoped, tag = 'scratch operand']
  %s0 = inlined_call_operand.vmem [shape: f32[6,32], index: 0, kind: input, shape index: {}]
  %s1 = inlined_call_operand.vmem [shape: bf16[32,64], index: 1, kind: input, shape index: {}]
  %s2 = inlined_call_operand.vmem [shape: f32[1,64], index: 2, kind: input, shape index: {}]
  %s3 = inlined_call_operand.vmem [shape: f32[6,64], index: 3, kind: output, shape index: {}]
  %s4 = sld [smem:[#allocation0]]
  $region30: #{bert_forward.15} parent=0
    _
  %s6 = ssub.s32 1, %s4
  %s7 = scalar_select 0, %s6, %s4
  // Predicated region
  $region2: #{bert_forward.15} parent=0 // pred_check
    _
  $region3: #{bert_forward.15} parent=0 // pred_check_branch
    %9 = sbr.rel (0) target = $region5
  $region4: #{bert_forward.15} parent=0 // pred_region
    _
  $region5: #{bert_forward.15} parent=0 // pred_fallthru
    _
  // Predicated region
  $region6: #{bert_forward.15} parent=0 // pred_check
    _
  $region7: #{bert_forward.15} parent=0 // pred_check_branch
    %11 = sbr.rel (0) target = $region9
  $region8: #{bert_forward.15} parent=0 // pred_region
    _
  $region9: #{bert_forward.15} parent=0 // pred_fallthru
    _
  // Predicated region
  $region10: #{bert_forward.15} parent=0 // pred_check
    _
  $region11: #{bert_forward.15} parent=0 // pred_check_branch
    %13 = sbr.rel (0) target = $region13
  $region12: #{bert_forward.15} parent=0 // pred_region
    _
  $region13: #{bert_forward.15} parent=0 // pred_fallthru
    _
  %p15 = scmp.eq.s32.totalorder 0, 0
  // Predicated region
  $region14: #{bert_forward.15} parent=0 // pred_check
    %p16 = pneg %p15
  $region15: #{bert_forward.15} parent=0 // pred_check_branch
    %18 = sbr.rel (%p16) target = $region17
  $region16: #{bert_forward.15} parent=0 // pred_region
    %vm19 = vcmask 521216
    %20 = vst.msk [vmem:[#allocation2] sm:$0x3f] %vm19, 0.0
  $region17: #{bert_forward.15} parent=0 // pred_fallthru
    _
  %v21 = vld [vmem:[#allocation2] sm:$0x3f]
  %v22 = vld [vmem:[%s0] sm:$0x3f]
  %v23 = vpack.c.bf16 %v22, %v22
  %v24 = vld [vmem:[%s1] sm:$0xf]
  %v25 = vld [vmem:[%s1 + $0x4] sm:$0xf]
  %v26 = vld [vmem:[%s1 + $0x8] sm:$0xf]
  %v27 = vld [vmem:[%s1 + $0xc] sm:$0xf]
  %v32 = vunpack.c.l.b16 %v24
  %v33 = vunpack.c.l.b16 %v25
  %v34 = vunpack.c.l.b16 %v26
  %v35 = vunpack.c.l.b16 %v27
  %v36 = vpack.c.b16 %v33, %v32
  %v37 = vpack.c.b16 %v35, %v34
  %vm40 = vcmask 261120
  %v42 = vsel %vm40, %v23, 0
  %44 = vmatprep.subr.bf16.mxu0 0
  %45 = vmatpush1.bf16.msra.mxu0 %v36
  %46 = vmatprep.subr.bf16.mxu0 0
  %47 = vmatpush1.bf16.msra.mxu0 %v37
  %48 = vmatprep.subr.bf16.mxu0 0
  %49 = vmatpush1.bf16.msra.mxu0 0
  %50 = vmatprep.subr.bf16.mxu0 0
  %51 = vmatpush1.bf16.msra.mxu0 0
  %52 = vmatprep.subr.bf16.mxu0 0
  %53 = vmatpush1.bf16.msra.mxu0 0
  %54 = vmatprep.subr.bf16.mxu0 0
  %55 = vmatpush1.bf16.msra.mxu0 0
  %56 = vmatprep.subr.bf16.mxu0 0
  %57 = vmatpush1.bf16.msra.mxu0 0
  %58 = vmatprep.subr.bf16.mxu0 0
  %59 = vmatpush1.bf16.msra.mxu0 0
  %60 = vmatprep.subr.bf16.mxu0 0
  %61 = vmatpush1.bf16.msra.mxu0 0
  %62 = vmatprep.subr.bf16.mxu0 0
  %63 = vmatpush1.bf16.msra.mxu0 0
  %64 = vmatprep.subr.bf16.mxu0 0
  %65 = vmatpush1.bf16.msra.mxu0 0
  %66 = vmatprep.subr.bf16.mxu0 0
  %67 = vmatpush1.bf16.msra.mxu0 0
  %68 = vmatprep.subr.bf16.mxu0 0
  %69 = vmatpush1.bf16.msra.mxu0 0
  %70 = vmatprep.subr.bf16.mxu0 0
  %71 = vmatpush1.bf16.msra.mxu0 0
  %72 = vmatprep.subr.bf16.mxu0 0
  %73 = vmatpush1.bf16.msra.mxu0 0
  %74 = vmatprep.subr.bf16.mxu0 0
  %75 = vmatpush1.bf16.msra.mxu0 0
  %76 = vmatprep.mubr.bf16.mxu0 0
  %77 = vmatmul.mubr.bf16.gmra.mrb[0].mxu0 %v42
  %v78 = vpop.f32.mrb[0].mxu0
  %v79 = vadd.f32 0.0, %v78
  %v80 = vpop.f32.mrb[0].mxu0
  %v81 = vpop.f32.mrb[0].mxu0
  %v82 = vpop.f32.mrb[0].mxu0
  %83 = vdwg.mxu0
  %v84 = vadd.f32 %v21, %v79
  %vm85 = vcmask 521216
  %86 = vst.msk [vmem:[#allocation2] sm:$0x3f] %vm85, %v84
  // Predicated region
  $region18: #{bert_forward.15} parent=0 // pred_check
    %p87 = pneg %p15
  $region19: #{bert_forward.15} parent=0 // pred_check_branch
    %89 = sbr.rel (%p87) target = $region21
  $region20: #{bert_forward.15} parent=0 // pred_region
    %v90 = vld [vmem:[#allocation2] sm:$0x3f]
    %v91 = vld [vmem:[%s2] sm:$0x1]
    %v93 = vlaneseq
    %v94 = vshrl.u32 %v93, 7
    %v95 = vsub.s32 0, %v94
    %v96 = vrot.slane %v91, %v95
    %v98 = vadd.f32 %v90, %v96
    %99 = vst.msk [vmem:[%s3] sm:$0x3f] %vm85, %v98
  $region21: #{bert_forward.15} parent=0 // pred_fallthru
    _
  // Predicated region
  $region22: #{bert_forward.15} parent=0 // pred_check
    _
  $region23: #{bert_forward.15} parent=0 // pred_check_branch
    %101 = sbr.rel (0) target = $region25
  $region24: #{bert_forward.15} parent=0 // pred_region
    _
  $region25: #{bert_forward.15} parent=0 // pred_fallthru
    _
  // Predicated region
  $region26: #{bert_forward.15} parent=0 // pred_check
    _
  $region27: #{bert_forward.15} parent=0 // pred_check_branch
    %103 = sbr.rel (0) target = $region29
  $region28: #{bert_forward.15} parent=0 // pred_region
    _
  $region29: #{bert_forward.15} parent=0 // pred_fallthru
    _

// kernel: bert_forward.16
$region0: #{bert_forward.16}
  #allocation0 [shape = 'u32[]', space=smem, size = 0x4, offset = 0x4, fixed_abs, tag = 'smem constant byte address 0x4 - core index']
  #allocation1 [shape = 'u32[144,128]{1,0:T(1,128)}', space=vmem, size = 0x12000, scoped, tag = 'internal scratch']
  #allocation2 [shape = 'f32[2,32]{1,0:T(2,128)}', space=vmem, size = 0x400, scoped, tag = 'scratch operand']
  %s0 = inlined_call_operand.vmem [shape: f32[2,32], index: 0, kind: input, shape index: {}]
  %s1 = inlined_call_operand.vmem [shape: bf16[32,32], index: 1, kind: input, shape index: {}]
  %s2 = inlined_call_operand.vmem [shape: f32[1,32], index: 2, kind: input, shape index: {}]
  %s3 = inlined_call_operand.vmem [shape: f32[2,32], index: 3, kind: output, shape index: {}]
  %s4 = sld [smem:[#allocation0]]
  $region30: #{bert_forward.16} parent=0
    _
  %s6 = ssub.s32 1, %s4
  %s7 = scalar_select 0, %s6, %s4
  // Predicated region
  $region2: #{bert_forward.16} parent=0 // pred_check
    _
  $region3: #{bert_forward.16} parent=0 // pred_check_branch
    %9 = sbr.rel (0) target = $region5
  $region4: #{bert_forward.16} parent=0 // pred_region
    _
  $region5: #{bert_forward.16} parent=0 // pred_fallthru
    _
  // Predicated region
  $region6: #{bert_forward.16} parent=0 // pred_check
    _
  $region7: #{bert_forward.16} parent=0 // pred_check_branch
    %11 = sbr.rel (0) target = $region9
  $region8: #{bert_forward.16} parent=0 // pred_region
    _
  $region9: #{bert_forward.16} parent=0 // pred_fallthru
    _
  // Predicated region
  $region10: #{bert_forward.16} parent=0 // pred_check
    _
  $region11: #{bert_forward.16} parent=0 // pred_check_branch
    %13 = sbr.rel (0) target = $region13
  $region12: #{bert_forward.16} parent=0 // pred_region
    _
  $region13: #{bert_forward.16} parent=0 // pred_fallthru
    _
  %p15 = scmp.eq.s32.totalorder 0, 0
  // Predicated region
  $region14: #{bert_forward.16} parent=0 // pred_check
    %p16 = pneg %p15
  $region15: #{bert_forward.16} parent=0 // pred_check_branch
    %18 = sbr.rel (%p16) target = $region17
  $region16: #{bert_forward.16} parent=0 // pred_region
    %vm19 = vcmask 254976
    %20 = vst.msk [vmem:[#allocation2] sm:$0x3] %vm19, 0.0
  $region17: #{bert_forward.16} parent=0 // pred_fallthru
    _
  %v21 = vld [vmem:[#allocation2] sm:$0x3]
  %v22 = vld [vmem:[%s0] sm:$0x3]
  %v23 = vpack.c.bf16 %v22, %v22
  %v24 = vld [vmem:[%s1] sm:$0xf]
  %v25 = vld [vmem:[%s1 + $0x4] sm:$0xf]
  %v26 = vld [vmem:[%s1 + $0x8] sm:$0xf]
  %v27 = vld [vmem:[%s1 + $0xc] sm:$0xf]
  %v32 = vunpack.c.l.b16 %v24
  %v33 = vunpack.c.l.b16 %v25
  %v34 = vunpack.c.l.b16 %v26
  %v35 = vunpack.c.l.b16 %v27
  %v36 = vpack.c.b16 %v33, %v32
  %v37 = vpack.c.b16 %v35, %v34
  %vm40 = vcmask 261120
  %v42 = vsel %vm40, %v23, 0
  %44 = vmatprep.subr.bf16.mxu0 0
  %45 = vmatpush1.bf16.msra.mxu0 %v36
  %46 = vmatprep.subr.bf16.mxu0 0
  %47 = vmatpush1.bf16.msra.mxu0 %v37
  %48 = vmatprep.subr.bf16.mxu0 0
  %49 = vmatpush1.bf16.msra.mxu0 0
  %50 = vmatprep.subr.bf16.mxu0 0
  %51 = vmatpush1.bf16.msra.mxu0 0
  %52 = vmatprep.subr.bf16.mxu0 0
  %53 = vmatpush1.bf16.msra.mxu0 0
  %54 = vmatprep.subr.bf16.mxu0 0
  %55 = vmatpush1.bf16.msra.mxu0 0
  %56 = vmatprep.subr.bf16.mxu0 0
  %57 = vmatpush1.bf16.msra.mxu0 0
  %58 = vmatprep.subr.bf16.mxu0 0
  %59 = vmatpush1.bf16.msra.mxu0 0
  %60 = vmatprep.subr.bf16.mxu0 0
  %61 = vmatpush1.bf16.msra.mxu0 0
  %62 = vmatprep.subr.bf16.mxu0 0
  %63 = vmatpush1.bf16.msra.mxu0 0
  %64 = vmatprep.subr.bf16.mxu0 0
  %65 = vmatpush1.bf16.msra.mxu0 0
  %66 = vmatprep.subr.bf16.mxu0 0
  %67 = vmatpush1.bf16.msra.mxu0 0
  %68 = vmatprep.subr.bf16.mxu0 0
  %69 = vmatpush1.bf16.msra.mxu0 0
  %70 = vmatprep.subr.bf16.mxu0 0
  %71 = vmatpush1.bf16.msra.mxu0 0
  %72 = vmatprep.subr.bf16.mxu0 0
  %73 = vmatpush1.bf16.msra.mxu0 0
  %74 = vmatprep.subr.bf16.mxu0 0
  %75 = vmatpush1.bf16.msra.mxu0 0
  %76 = vmatprep.mubr.bf16.mxu0 0
  %77 = vmatmul.mubr.bf16.gmra.mrb[0].mxu0 %v42
  %v78 = vpop.f32.mrb[0].mxu0
  %v79 = vadd.f32 0.0, %v78
  %v80 = vpop.f32.mrb[0].mxu0
  %v81 = vpop.f32.mrb[0].mxu0
  %v82 = vpop.f32.mrb[0].mxu0
  %83 = vdwg.mxu0
  %v84 = vadd.f32 %v21, %v79
  %vm85 = vcmask 254976
  %86 = vst.msk [vmem:[#allocation2] sm:$0x3] %vm85, %v84
  // Predicated region
  $region18: #{bert_forward.16} parent=0 // pred_check
    %p87 = pneg %p15
  $region19: #{bert_forward.16} parent=0 // pred_check_branch
    %89 = sbr.rel (%p87) target = $region21
  $region20: #{bert_forward.16} parent=0 // pred_region
    %v90 = vld [vmem:[#allocation2] sm:$0x3]
    %v91 = vld [vmem:[%s2] sm:$0x1]
    %v93 = vlaneseq
    %v94 = vshrl.u32 %v93, 7
    %v95 = vsub.s32 0, %v94
    %v96 = vrot.slane %v91, %v95
    %v98 = vadd.f32 %v90, %v96
    %v99 = vtanh.pop %v98
    %100 = vst.msk [vmem:[%s3] sm:$0x3] %vm85, %v99
  $region21: #{bert_forward.16} parent=0 // pred_fallthru
    _
  // Predicated region
  $region22: #{bert_forward.16} parent=0 // pred_check
    _
  $region23: #{bert_forward.16} parent=0 // pred_check_branch
    %102 = sbr.rel (0) target = $region25
  $region24: #{bert_forward.16} parent=0 // pred_region
    _
  $region25: #{bert_forward.16} parent=0 // pred_fallthru
    _
  // Predicated region
  $region26: #{bert_forward.16} parent=0 // pred_check
    _
  $region27: #{bert_forward.16} parent=0 // pred_check_branch
    %104 = sbr.rel (0) target = $region29
  $region28: #{bert_forward.16} parent=0 // pred_region
    _
  $region29: #{bert_forward.16} parent=0 // pred_fallthru
    _

// kernel: bert_forward.17
$region0: #{bert_forward.17}
  #allocation0 [shape = 'u32[]', space=smem, size = 0x4, offset = 0x4, fixed_abs, tag = 'smem constant byte address 0x4 - core index']
  #allocation1 [shape = 'u32[144,128]{1,0:T(1,128)}', space=vmem, size = 0x12000, scoped, tag = 'internal scratch']
  #allocation2 [shape = 'f32[2,2]{1,0:T(2,128)}', space=vmem, size = 0x400, scoped, tag = 'scratch operand']
  %s0 = inlined_call_operand.vmem [shape: f32[2,32], index: 0, kind: input, shape index: {}]
  %s1 = inlined_call_operand.vmem [shape: bf16[32,2], index: 1, kind: input, shape index: {}]
  %s2 = inlined_call_operand.vmem [shape: f32[1,2], index: 2, kind: input, shape index: {}]
  %s3 = inlined_call_operand.hbm [shape: f32[2,2], index: 3, kind: output, shape index: {}]
  %s4 = sld [smem:[#allocation0]]
  $region30: #{bert_forward.17} parent=0
    _
  %s6 = ssub.s32 1, %s4
  %s7 = scalar_select 0, %s6, %s4
  $region1: #{bert_forward.17} parent=0
    #allocation3 [shape = 'u8[1024]{0}', space=vmem, size = 0x400, scoped, tag = 'output window, operand 0, single buffered']
    #allocation4 [shape = 's32[1]{0}', space=sflag, size = 0x4, scoped, tag = 'scoped memory for bert_forward.17']
    %8 = vsyncpa [#allocation4], 0
    // Predicated region
    $region2: #{bert_forward.17} parent=1 // pred_check
      _
    $region3: #{bert_forward.17} parent=1 // pred_check_branch
      %10 = sbr.rel (0) target = $region5
    $region4: #{bert_forward.17} parent=1 // pred_region
      _
    $region5: #{bert_forward.17} parent=1 // pred_fallthru
      _
    // Predicated region
    $region6: #{bert_forward.17} parent=1 // pred_check
      _
    $region7: #{bert_forward.17} parent=1 // pred_check_branch
      %12 = sbr.rel (0) target = $region9
    $region8: #{bert_forward.17} parent=1 // pred_region
      _
    $region9: #{bert_forward.17} parent=1 // pred_fallthru
      _
    // Predicated region
    $region10: #{bert_forward.17} parent=1 // pred_check
      _
    $region11: #{bert_forward.17} parent=1 // pred_check_branch
      %14 = sbr.rel (0) target = $region13
    $region12: #{bert_forward.17} parent=1 // pred_region
      _
    $region13: #{bert_forward.17} parent=1 // pred_fallthru
      _
    %p16 = scmp.eq.s32.totalorder 0, 0
    // Predicated region
    $region14: #{bert_forward.17} parent=1 // pred_check
      %p17 = pneg %p16
    $region15: #{bert_forward.17} parent=1 // pred_check_branch
      %19 = sbr.rel (%p17) target = $region17
    $region16: #{bert_forward.17} parent=1 // pred_region
      %vm20 = vcmask 9216
      %21 = vst.msk [vmem:[#allocation2] sm:$0x3] %vm20, 0.0
    $region17: #{bert_forward.17} parent=1 // pred_fallthru
      _
    %v22 = vld [vmem:[#allocation2] sm:$0x3]
    %v23 = vld [vmem:[%s0] sm:$0x3]
    %v24 = vpack.c.bf16 %v23, %v23
    %v25 = vld [vmem:[%s1] sm:$0xf]
    %v26 = vld [vmem:[%s1 + $0x4] sm:$0xf]
    %v27 = vld [vmem:[%s1 + $0x8] sm:$0xf]
    %v28 = vld [vmem:[%s1 + $0xc] sm:$0xf]
    %v33 = vunpack.c.l.b16 %v25
    %v34 = vunpack.c.l.b16 %v26
    %v35 = vunpack.c.l.b16 %v27
    %v36 = vunpack.c.l.b16 %v28
    %v37 = vpack.c.b16 %v34, %v33
    %v38 = vpack.c.b16 %v36, %v35
    %vm41 = vcmask 261120
    %v43 = vsel %vm41, %v24, 0
    %45 = vmatprep.subr.bf16.mxu0 0
    %46 = vmatpush1.bf16.msra.mxu0 %v37
    %47 = vmatprep.subr.bf16.mxu0 0
    %48 = vmatpush1.bf16.msra.mxu0 %v38
    %49 = vmatprep.subr.bf16.mxu0 0
    %50 = vmatpush1.bf16.msra.mxu0 0
    %51 = vmatprep.subr.bf16.mxu0 0
    %52 = vmatpush1.bf16.msra.mxu0 0
    %53 = vmatprep.subr.bf16.mxu0 0
    %54 = vmatpush1.bf16.msra.mxu0 0
    %55 = vmatprep.subr.bf16.mxu0 0
    %56 = vmatpush1.bf16.msra.mxu0 0
    %57 = vmatprep.subr.bf16.mxu0 0
    %58 = vmatpush1.bf16.msra.mxu0 0
    %59 = vmatprep.subr.bf16.mxu0 0
    %60 = vmatpush1.bf16.msra.mxu0 0
    %61 = vmatprep.subr.bf16.mxu0 0
    %62 = vmatpush1.bf16.msra.mxu0 0
    %63 = vmatprep.subr.bf16.mxu0 0
    %64 = vmatpush1.bf16.msra.mxu0 0
    %65 = vmatprep.subr.bf16.mxu0 0
    %66 = vmatpush1.bf16.msra.mxu0 0
    %67 = vmatprep.subr.bf16.mxu0 0
    %68 = vmatpush1.bf16.msra.mxu0 0
    %69 = vmatprep.subr.bf16.mxu0 0
    %70 = vmatpush1.bf16.msra.mxu0 0
    %71 = vmatprep.subr.bf16.mxu0 0
    %72 = vmatpush1.bf16.msra.mxu0 0
    %73 = vmatprep.subr.bf16.mxu0 0
    %74 = vmatpush1.bf16.msra.mxu0 0
    %75 = vmatprep.subr.bf16.mxu0 0
    %76 = vmatpush1.bf16.msra.mxu0 0
    %77 = vmatprep.mubr.bf16.mxu0 0
    %78 = vmatmul.mubr.bf16.gmra.mrb[0].mxu0 %v43
    %v79 = vpop.f32.mrb[0].mxu0
    %v80 = vadd.f32 0.0, %v79
    %v81 = vpop.f32.mrb[0].mxu0
    %v82 = vpop.f32.mrb[0].mxu0
    %v83 = vpop.f32.mrb[0].mxu0
    %84 = vdwg.mxu0
    %v85 = vadd.f32 %v22, %v80
    %vm86 = vcmask 9216
    %87 = vst.msk [vmem:[#allocation2] sm:$0x3] %vm86, %v85
    // Predicated region
    $region18: #{bert_forward.17} parent=1 // pred_check
      %p88 = pneg %p16
    $region19: #{bert_forward.17} parent=1 // pred_check_branch
      %90 = sbr.rel (%p88) target = $region21
    $region20: #{bert_forward.17} parent=1 // pred_region
      %v91 = vld [vmem:[#allocation2] sm:$0x3]
      %v92 = vld [vmem:[%s2] sm:$0x1]
      %v94 = vlaneseq
      %v95 = vshrl.u32 %v94, 7
      %v96 = vsub.s32 0, %v95
      %v97 = vrot.slane %v92, %v96
      %v99 = vadd.f32 %v91, %v97
      %100 = vst.msk [vmem:[#allocation3] sm:$0x3] %vm86, %v99
    $region21: #{bert_forward.17} parent=1 // pred_fallthru
      _
    // Predicated region
    $region22: #{bert_forward.17} parent=1 // pred_check
      _
    $region23: #{bert_forward.17} parent=1 // pred_check_branch
      %102 = sbr.rel (0) target = $region25
    $region24: #{bert_forward.17} parent=1 // pred_region
      %s104 = ssub.s32 32, 32
      %105 = vsyncadd [#allocation4], %s104
      %s107 = sshll.u32 [#allocation3], 4
      %s108 = int_to_ptr.vmem [resolvable:$true] %s107
      %110 = dma.vmem_to_hbm [thread:$0]  %s108, 32, %s3, [#allocation4]
    $region25: #{bert_forward.17} parent=1 // pred_fallthru
      _
    // Predicated region
    $region26: #{bert_forward.17} parent=1 // pred_check
      _
    $region27: #{bert_forward.17} parent=1 // pred_check_branch
      %112 = sbr.rel (0) target = $region29
    $region28: #{bert_forward.17} parent=1 // pred_region
      %113 = dma.done [#allocation4], 32
    $region29: #{bert_forward.17} parent=1 // pred_fallthru
      _
    %114 = vsyncpa [#allocation4], 1

</llo_original>
